<compile_context>
chip_gen: v7x
topology: tpu7x:2x2x1
jax: 0.10.0
libtpu: 0.0.40
codegen_flags: <defaults>
</compile_context>

<pallas_src>
import math

import jax
import jax.numpy as jnp
from jax.experimental import pallas as pl
from jax.experimental.pallas import tpu as pltpu

_NSEM = 8  # max in-flight row DMAs (semaphore ring depth)


def _make_embedding_kernel(tile, vocab, emb):
    def kernel(ids_ref, table_ref, out_ref, rows_ref, sem_ref):
        # ids_ref   : SMEM (n_pad,) int32   -- scalar-prefetched token ids
        # table_ref : HBM  (vocab, emb)     -- raw ref, manual DMA only
        # out_ref   : VMEM (tile, emb)      -- pipelined output block for this step
        # rows_ref  : VMEM (tile, emb)      -- gather landing buffer
        # sem_ref   : DMA semaphore ring of _NSEM
        base = pl.program_id(0) * tile

        def issue(t):
            # nn.Embedding raises on out-of-range ids; clamp instead so a bad id
            # cannot trigger an out-of-bounds DMA fault.
            idx = jnp.clip(ids_ref[base + t], 0, vocab - 1)
            pltpu.make_async_copy(
                table_ref.at[pl.ds(idx, 1), :],
                rows_ref.at[pl.ds(t, 1), :],
                sem_ref.at[t % _NSEM],
            ).start()

        def wait(t):
            pltpu.make_async_copy(
                table_ref.at[pl.ds(0, 1), :],     # only shape matters for the wait
                rows_ref.at[pl.ds(t, 1), :],
                sem_ref.at[t % _NSEM],
            ).wait()

        n_prime = min(tile, _NSEM)

        @pl.loop(0, n_prime, unroll=True)
        def _(t):
            issue(t)

        if tile > _NSEM:
            @pl.loop(0, tile - _NSEM)
            def _(t):
                wait(t)              # free the semaphore slot ...
                issue(t + _NSEM)     # ... then reuse it for the next row

        @pl.loop(max(0, tile - _NSEM), tile, unroll=True)
        def _(t):
            wait(t)

        # Single vector copy into the pipelined output block.
        # TODO(synk): for real models keep embedding_size a multiple of 128 so this
        # store (and the output writeback) is lane-dense; emb=32 uses 32/128 lanes.
        out_ref[...] = rows_ref[...]

    return kernel


def embedding_lookup(ids, table, *, tile=256):
    """Pallas equivalent of nn.Embedding(vocab, emb)(ids).

    ids   : integer array, any shape
    table : (vocab_size, embedding_size) float array
    returns ids.shape + (embedding_size,) array of table.dtype
    """
    vocab, emb = table.shape
    lead_shape = ids.shape
    n = math.prod(lead_shape)

    # Token tile: default 256 (v6e/v7x; 128 is a good choice on v5e), at least the
    # sublane granule of 8, and no bigger than needed so small inputs run in a
    # single grid step.
    tile = max(8, min(tile, ((n + 7) // 8) * 8))
    n_pad = ((n + tile - 1) // tile) * tile

    ids_flat = ids.reshape(-1).astype(jnp.int32)
    if n_pad != n:
        # Padded tokens gather row 0 and are discarded below.
        ids_flat = jnp.pad(ids_flat, (0, n_pad - n))

    grid = (n_pad // tile,)
    kernel = _make_embedding_kernel(tile, vocab, emb)

    out = pl.pallas_call(
        kernel,
        out_shape=jax.ShapeDtypeStruct((n_pad, emb), table.dtype),
        grid_spec=pltpu.PrefetchScalarGridSpec(
            num_scalar_prefetch=1,                        # ids -> SMEM
            grid=grid,
            in_specs=[pl.BlockSpec(memory_space=pl.ANY)],  # table stays in HBM
            out_specs=pl.BlockSpec((tile, emb), lambda i, ids: (i, 0)),
            scratch_shapes=[
                pltpu.VMEM((tile, emb), table.dtype),
                pltpu.SemaphoreType.DMA((_NSEM,)),
            ],
        ),
        compiler_params=pltpu.CompilerParams(
            dimension_semantics=("parallel",),            # shards across TCs on v7x
        ),
    )(ids_flat, table)

    return out[:n].reshape(*lead_shape, emb)


if __name__ == "__main__":
    # Module config (synthetic, deterministic init; no pretrained GloVe load)
    # TODO(synk): load_pretrained / load_GloVe read files at init-time; not part of forward.
    vocab_size = 64
    embedding_size = 32
    batch, seq = 2, 8

    key = jax.random.PRNGKey(0)
    k_w, k_i = jax.random.split(key)

    # nn.Embedding weight init ~ N(0, 1); deterministic via PRNGKey(0)
    table = jax.random.normal(k_w, (vocab_size, embedding_size), dtype=jnp.float32)
    ids = jax.random.randint(k_i, (batch, seq), 0, vocab_size, dtype=jnp.int32)

    out = embedding_lookup(ids, table)
    out = jax.block_until_ready(out)

    # Correctness check against plain gather semantics of nn.Embedding
    ref = jnp.take(table, ids, axis=0)
    assert out.shape == (batch, seq, embedding_size)
    assert jnp.allclose(out, ref, atol=1e-6), "mismatch vs reference gather"

    print("KERNEL_OK")
</pallas_src>

<mosaic_0001>
module attributes {stable_mosaic.version = 11 : i64} {
  func.func @kernel(%arg0: i32, %arg1: memref<16xi32, #tpu.memory_space<smem>>, %arg2: memref<64x32xf32, #tpu.memory_space<any>>, %arg3: memref<16x32xf32, #tpu.memory_space<vmem>>, %arg4: memref<16x32xf32, #tpu.memory_space<vmem>>, %arg5: memref<8x!tpu.dma_semaphore, #tpu.memory_space<semaphore_mem>>) attributes {dimension_semantics = [#tpu.dimension_semantics<parallel>], iteration_bounds = array<i64: 1>, scalar_prefetch = 1 : i64, scratch_operands = 2 : i64, tpu.core_type = #tpu.core_type<tc>, window_params = [{}, {transform_indices = @transform_1, window_bounds = array<i64: 16, 32>}]} {
    %c16_i32 = arith.constant 16 : i32
    %0 = arith.muli %arg0, %c16_i32 : i32
    %c0_i32 = arith.constant 0 : i32
    %c1_i32 = arith.constant 1 : i32
    %1 = arith.muli %c0_i32, %c1_i32 : i32
    %c0_i32_0 = arith.constant 0 : i32
    %2 = arith.addi %c0_i32_0, %1 : i32
    %3 = arith.addi %0, %2 : i32
    %4 = arith.index_cast %3 : i32 to index
    %5 = memref.load %arg1[%4] : memref<16xi32, #tpu.memory_space<smem>>
    %c0_i32_1 = arith.constant 0 : i32
    %c63_i32 = arith.constant 63 : i32
    %6 = arith.maxsi %c0_i32_1, %5 : i32
    %7 = arith.minsi %c63_i32, %6 : i32
    %c8_i32 = arith.constant 8 : i32
    %c0_i32_2 = arith.constant 0 : i32
    %8 = arith.cmpi eq, %c8_i32, %c0_i32_2 : i32
    %c1_i32_3 = arith.constant 1 : i32
    %9 = arith.select %8, %c1_i32_3, %c8_i32 : i32
    %10 = arith.remsi %2, %9 : i32
    %c0_i32_4 = arith.constant 0 : i32
    %11 = arith.cmpi ne, %10, %c0_i32_4 : i32
    %c0_i32_5 = arith.constant 0 : i32
    %12 = arith.cmpi slt, %10, %c0_i32_5 : i32
    %c0_i32_6 = arith.constant 0 : i32
    %13 = arith.cmpi slt, %9, %c0_i32_6 : i32
    %14 = arith.xori %12, %13 : i1
    %15 = arith.andi %14, %11 : i1
    %16 = arith.addi %10, %9 : i32
    %17 = arith.select %15, %16, %10 : i32
    %c0_i32_7 = arith.constant 0 : i32
    %18 = tpu.memref_slice %arg2[%7, %c0_i32_7] : memref<64x32xf32, #tpu.memory_space<any>> -> memref<1x32xf32, #tpu.memory_space<any>>
    %c0_i32_8 = arith.constant 0 : i32
    %19 = tpu.memref_slice %arg4[%2, %c0_i32_8] : memref<16x32xf32, #tpu.memory_space<vmem>> -> memref<1x32xf32, #tpu.memory_space<vmem>>
    %20 = tpu.memref_slice %arg5[%17] : memref<8x!tpu.dma_semaphore, #tpu.memory_space<semaphore_mem>> -> memref<1x!tpu.dma_semaphore, #tpu.memory_space<semaphore_mem>>
    %21 = tpu.memref_squeeze %20 : memref<1x!tpu.dma_semaphore, #tpu.memory_space<semaphore_mem>> -> memref<!tpu.dma_semaphore, #tpu.memory_space<semaphore_mem>>
    tpu.enqueue_dma source(%18 : memref<1x32xf32, #tpu.memory_space<any>>) target(%19 : memref<1x32xf32, #tpu.memory_space<vmem>>) target_semaphore(%21 : memref<!tpu.dma_semaphore, #tpu.memory_space<semaphore_mem>>)
    %c1_i32_9 = arith.constant 1 : i32
    %c1_i32_10 = arith.constant 1 : i32
    %22 = arith.muli %c1_i32_9, %c1_i32_10 : i32
    %c0_i32_11 = arith.constant 0 : i32
    %23 = arith.addi %c0_i32_11, %22 : i32
    %24 = arith.addi %0, %23 : i32
    %25 = arith.index_cast %24 : i32 to index
    %26 = memref.load %arg1[%25] : memref<16xi32, #tpu.memory_space<smem>>
    %c0_i32_12 = arith.constant 0 : i32
    %c63_i32_13 = arith.constant 63 : i32
    %27 = arith.maxsi %c0_i32_12, %26 : i32
    %28 = arith.minsi %c63_i32_13, %27 : i32
    %c8_i32_14 = arith.constant 8 : i32
    %c0_i32_15 = arith.constant 0 : i32
    %29 = arith.cmpi eq, %c8_i32_14, %c0_i32_15 : i32
    %c1_i32_16 = arith.constant 1 : i32
    %30 = arith.select %29, %c1_i32_16, %c8_i32_14 : i32
    %31 = arith.remsi %23, %30 : i32
    %c0_i32_17 = arith.constant 0 : i32
    %32 = arith.cmpi ne, %31, %c0_i32_17 : i32
    %c0_i32_18 = arith.constant 0 : i32
    %33 = arith.cmpi slt, %31, %c0_i32_18 : i32
    %c0_i32_19 = arith.constant 0 : i32
    %34 = arith.cmpi slt, %30, %c0_i32_19 : i32
    %35 = arith.xori %33, %34 : i1
    %36 = arith.andi %35, %32 : i1
    %37 = arith.addi %31, %30 : i32
    %38 = arith.select %36, %37, %31 : i32
    %c0_i32_20 = arith.constant 0 : i32
    %39 = tpu.memref_slice %arg2[%28, %c0_i32_20] : memref<64x32xf32, #tpu.memory_space<any>> -> memref<1x32xf32, #tpu.memory_space<any>>
    %c0_i32_21 = arith.constant 0 : i32
    %40 = tpu.memref_slice %arg4[%23, %c0_i32_21] : memref<16x32xf32, #tpu.memory_space<vmem>> -> memref<1x32xf32, #tpu.memory_space<vmem>>
    %41 = tpu.memref_slice %arg5[%38] : memref<8x!tpu.dma_semaphore, #tpu.memory_space<semaphore_mem>> -> memref<1x!tpu.dma_semaphore, #tpu.memory_space<semaphore_mem>>
    %42 = tpu.memref_squeeze %41 : memref<1x!tpu.dma_semaphore, #tpu.memory_space<semaphore_mem>> -> memref<!tpu.dma_semaphore, #tpu.memory_space<semaphore_mem>>
    tpu.enqueue_dma source(%39 : memref<1x32xf32, #tpu.memory_space<any>>) target(%40 : memref<1x32xf32, #tpu.memory_space<vmem>>) target_semaphore(%42 : memref<!tpu.dma_semaphore, #tpu.memory_space<semaphore_mem>>)
    %c2_i32 = arith.constant 2 : i32
    %c1_i32_22 = arith.constant 1 : i32
    %43 = arith.muli %c2_i32, %c1_i32_22 : i32
    %c0_i32_23 = arith.constant 0 : i32
    %44 = arith.addi %c0_i32_23, %43 : i32
    %45 = arith.addi %0, %44 : i32
    %46 = arith.index_cast %45 : i32 to index
    %47 = memref.load %arg1[%46] : memref<16xi32, #tpu.memory_space<smem>>
    %c0_i32_24 = arith.constant 0 : i32
    %c63_i32_25 = arith.constant 63 : i32
    %48 = arith.maxsi %c0_i32_24, %47 : i32
    %49 = arith.minsi %c63_i32_25, %48 : i32
    %c8_i32_26 = arith.constant 8 : i32
    %c0_i32_27 = arith.constant 0 : i32
    %50 = arith.cmpi eq, %c8_i32_26, %c0_i32_27 : i32
    %c1_i32_28 = arith.constant 1 : i32
    %51 = arith.select %50, %c1_i32_28, %c8_i32_26 : i32
    %52 = arith.remsi %44, %51 : i32
    %c0_i32_29 = arith.constant 0 : i32
    %53 = arith.cmpi ne, %52, %c0_i32_29 : i32
    %c0_i32_30 = arith.constant 0 : i32
    %54 = arith.cmpi slt, %52, %c0_i32_30 : i32
    %c0_i32_31 = arith.constant 0 : i32
    %55 = arith.cmpi slt, %51, %c0_i32_31 : i32
    %56 = arith.xori %54, %55 : i1
    %57 = arith.andi %56, %53 : i1
    %58 = arith.addi %52, %51 : i32
    %59 = arith.select %57, %58, %52 : i32
    %c0_i32_32 = arith.constant 0 : i32
    %60 = tpu.memref_slice %arg2[%49, %c0_i32_32] : memref<64x32xf32, #tpu.memory_space<any>> -> memref<1x32xf32, #tpu.memory_space<any>>
    %c0_i32_33 = arith.constant 0 : i32
    %61 = tpu.memref_slice %arg4[%44, %c0_i32_33] : memref<16x32xf32, #tpu.memory_space<vmem>> -> memref<1x32xf32, #tpu.memory_space<vmem>>
    %62 = tpu.memref_slice %arg5[%59] : memref<8x!tpu.dma_semaphore, #tpu.memory_space<semaphore_mem>> -> memref<1x!tpu.dma_semaphore, #tpu.memory_space<semaphore_mem>>
    %63 = tpu.memref_squeeze %62 : memref<1x!tpu.dma_semaphore, #tpu.memory_space<semaphore_mem>> -> memref<!tpu.dma_semaphore, #tpu.memory_space<semaphore_mem>>
    tpu.enqueue_dma source(%60 : memref<1x32xf32, #tpu.memory_space<any>>) target(%61 : memref<1x32xf32, #tpu.memory_space<vmem>>) target_semaphore(%63 : memref<!tpu.dma_semaphore, #tpu.memory_space<semaphore_mem>>)
    %c3_i32 = arith.constant 3 : i32
    %c1_i32_34 = arith.constant 1 : i32
    %64 = arith.muli %c3_i32, %c1_i32_34 : i32
    %c0_i32_35 = arith.constant 0 : i32
    %65 = arith.addi %c0_i32_35, %64 : i32
    %66 = arith.addi %0, %65 : i32
    %67 = arith.index_cast %66 : i32 to index
    %68 = memref.load %arg1[%67] : memref<16xi32, #tpu.memory_space<smem>>
    %c0_i32_36 = arith.constant 0 : i32
    %c63_i32_37 = arith.constant 63 : i32
    %69 = arith.maxsi %c0_i32_36, %68 : i32
    %70 = arith.minsi %c63_i32_37, %69 : i32
    %c8_i32_38 = arith.constant 8 : i32
    %c0_i32_39 = arith.constant 0 : i32
    %71 = arith.cmpi eq, %c8_i32_38, %c0_i32_39 : i32
    %c1_i32_40 = arith.constant 1 : i32
    %72 = arith.select %71, %c1_i32_40, %c8_i32_38 : i32
    %73 = arith.remsi %65, %72 : i32
    %c0_i32_41 = arith.constant 0 : i32
    %74 = arith.cmpi ne, %73, %c0_i32_41 : i32
    %c0_i32_42 = arith.constant 0 : i32
    %75 = arith.cmpi slt, %73, %c0_i32_42 : i32
    %c0_i32_43 = arith.constant 0 : i32
    %76 = arith.cmpi slt, %72, %c0_i32_43 : i32
    %77 = arith.xori %75, %76 : i1
    %78 = arith.andi %77, %74 : i1
    %79 = arith.addi %73, %72 : i32
    %80 = arith.select %78, %79, %73 : i32
    %c0_i32_44 = arith.constant 0 : i32
    %81 = tpu.memref_slice %arg2[%70, %c0_i32_44] : memref<64x32xf32, #tpu.memory_space<any>> -> memref<1x32xf32, #tpu.memory_space<any>>
    %c0_i32_45 = arith.constant 0 : i32
    %82 = tpu.memref_slice %arg4[%65, %c0_i32_45] : memref<16x32xf32, #tpu.memory_space<vmem>> -> memref<1x32xf32, #tpu.memory_space<vmem>>
    %83 = tpu.memref_slice %arg5[%80] : memref<8x!tpu.dma_semaphore, #tpu.memory_space<semaphore_mem>> -> memref<1x!tpu.dma_semaphore, #tpu.memory_space<semaphore_mem>>
    %84 = tpu.memref_squeeze %83 : memref<1x!tpu.dma_semaphore, #tpu.memory_space<semaphore_mem>> -> memref<!tpu.dma_semaphore, #tpu.memory_space<semaphore_mem>>
    tpu.enqueue_dma source(%81 : memref<1x32xf32, #tpu.memory_space<any>>) target(%82 : memref<1x32xf32, #tpu.memory_space<vmem>>) target_semaphore(%84 : memref<!tpu.dma_semaphore, #tpu.memory_space<semaphore_mem>>)
    %c4_i32 = arith.constant 4 : i32
    %c1_i32_46 = arith.constant 1 : i32
    %85 = arith.muli %c4_i32, %c1_i32_46 : i32
    %c0_i32_47 = arith.constant 0 : i32
    %86 = arith.addi %c0_i32_47, %85 : i32
    %87 = arith.addi %0, %86 : i32
    %88 = arith.index_cast %87 : i32 to index
    %89 = memref.load %arg1[%88] : memref<16xi32, #tpu.memory_space<smem>>
    %c0_i32_48 = arith.constant 0 : i32
    %c63_i32_49 = arith.constant 63 : i32
    %90 = arith.maxsi %c0_i32_48, %89 : i32
    %91 = arith.minsi %c63_i32_49, %90 : i32
    %c8_i32_50 = arith.constant 8 : i32
    %c0_i32_51 = arith.constant 0 : i32
    %92 = arith.cmpi eq, %c8_i32_50, %c0_i32_51 : i32
    %c1_i32_52 = arith.constant 1 : i32
    %93 = arith.select %92, %c1_i32_52, %c8_i32_50 : i32
    %94 = arith.remsi %86, %93 : i32
    %c0_i32_53 = arith.constant 0 : i32
    %95 = arith.cmpi ne, %94, %c0_i32_53 : i32
    %c0_i32_54 = arith.constant 0 : i32
    %96 = arith.cmpi slt, %94, %c0_i32_54 : i32
    %c0_i32_55 = arith.constant 0 : i32
    %97 = arith.cmpi slt, %93, %c0_i32_55 : i32
    %98 = arith.xori %96, %97 : i1
    %99 = arith.andi %98, %95 : i1
    %100 = arith.addi %94, %93 : i32
    %101 = arith.select %99, %100, %94 : i32
    %c0_i32_56 = arith.constant 0 : i32
    %102 = tpu.memref_slice %arg2[%91, %c0_i32_56] : memref<64x32xf32, #tpu.memory_space<any>> -> memref<1x32xf32, #tpu.memory_space<any>>
    %c0_i32_57 = arith.constant 0 : i32
    %103 = tpu.memref_slice %arg4[%86, %c0_i32_57] : memref<16x32xf32, #tpu.memory_space<vmem>> -> memref<1x32xf32, #tpu.memory_space<vmem>>
    %104 = tpu.memref_slice %arg5[%101] : memref<8x!tpu.dma_semaphore, #tpu.memory_space<semaphore_mem>> -> memref<1x!tpu.dma_semaphore, #tpu.memory_space<semaphore_mem>>
    %105 = tpu.memref_squeeze %104 : memref<1x!tpu.dma_semaphore, #tpu.memory_space<semaphore_mem>> -> memref<!tpu.dma_semaphore, #tpu.memory_space<semaphore_mem>>
    tpu.enqueue_dma source(%102 : memref<1x32xf32, #tpu.memory_space<any>>) target(%103 : memref<1x32xf32, #tpu.memory_space<vmem>>) target_semaphore(%105 : memref<!tpu.dma_semaphore, #tpu.memory_space<semaphore_mem>>)
    %c5_i32 = arith.constant 5 : i32
    %c1_i32_58 = arith.constant 1 : i32
    %106 = arith.muli %c5_i32, %c1_i32_58 : i32
    %c0_i32_59 = arith.constant 0 : i32
    %107 = arith.addi %c0_i32_59, %106 : i32
    %108 = arith.addi %0, %107 : i32
    %109 = arith.index_cast %108 : i32 to index
    %110 = memref.load %arg1[%109] : memref<16xi32, #tpu.memory_space<smem>>
    %c0_i32_60 = arith.constant 0 : i32
    %c63_i32_61 = arith.constant 63 : i32
    %111 = arith.maxsi %c0_i32_60, %110 : i32
    %112 = arith.minsi %c63_i32_61, %111 : i32
    %c8_i32_62 = arith.constant 8 : i32
    %c0_i32_63 = arith.constant 0 : i32
    %113 = arith.cmpi eq, %c8_i32_62, %c0_i32_63 : i32
    %c1_i32_64 = arith.constant 1 : i32
    %114 = arith.select %113, %c1_i32_64, %c8_i32_62 : i32
    %115 = arith.remsi %107, %114 : i32
    %c0_i32_65 = arith.constant 0 : i32
    %116 = arith.cmpi ne, %115, %c0_i32_65 : i32
    %c0_i32_66 = arith.constant 0 : i32
    %117 = arith.cmpi slt, %115, %c0_i32_66 : i32
    %c0_i32_67 = arith.constant 0 : i32
    %118 = arith.cmpi slt, %114, %c0_i32_67 : i32
    %119 = arith.xori %117, %118 : i1
    %120 = arith.andi %119, %116 : i1
    %121 = arith.addi %115, %114 : i32
    %122 = arith.select %120, %121, %115 : i32
    %c0_i32_68 = arith.constant 0 : i32
    %123 = tpu.memref_slice %arg2[%112, %c0_i32_68] : memref<64x32xf32, #tpu.memory_space<any>> -> memref<1x32xf32, #tpu.memory_space<any>>
    %c0_i32_69 = arith.constant 0 : i32
    %124 = tpu.memref_slice %arg4[%107, %c0_i32_69] : memref<16x32xf32, #tpu.memory_space<vmem>> -> memref<1x32xf32, #tpu.memory_space<vmem>>
    %125 = tpu.memref_slice %arg5[%122] : memref<8x!tpu.dma_semaphore, #tpu.memory_space<semaphore_mem>> -> memref<1x!tpu.dma_semaphore, #tpu.memory_space<semaphore_mem>>
    %126 = tpu.memref_squeeze %125 : memref<1x!tpu.dma_semaphore, #tpu.memory_space<semaphore_mem>> -> memref<!tpu.dma_semaphore, #tpu.memory_space<semaphore_mem>>
    tpu.enqueue_dma source(%123 : memref<1x32xf32, #tpu.memory_space<any>>) target(%124 : memref<1x32xf32, #tpu.memory_space<vmem>>) target_semaphore(%126 : memref<!tpu.dma_semaphore, #tpu.memory_space<semaphore_mem>>)
    %c6_i32 = arith.constant 6 : i32
    %c1_i32_70 = arith.constant 1 : i32
    %127 = arith.muli %c6_i32, %c1_i32_70 : i32
    %c0_i32_71 = arith.constant 0 : i32
    %128 = arith.addi %c0_i32_71, %127 : i32
    %129 = arith.addi %0, %128 : i32
    %130 = arith.index_cast %129 : i32 to index
    %131 = memref.load %arg1[%130] : memref<16xi32, #tpu.memory_space<smem>>
    %c0_i32_72 = arith.constant 0 : i32
    %c63_i32_73 = arith.constant 63 : i32
    %132 = arith.maxsi %c0_i32_72, %131 : i32
    %133 = arith.minsi %c63_i32_73, %132 : i32
    %c8_i32_74 = arith.constant 8 : i32
    %c0_i32_75 = arith.constant 0 : i32
    %134 = arith.cmpi eq, %c8_i32_74, %c0_i32_75 : i32
    %c1_i32_76 = arith.constant 1 : i32
    %135 = arith.select %134, %c1_i32_76, %c8_i32_74 : i32
    %136 = arith.remsi %128, %135 : i32
    %c0_i32_77 = arith.constant 0 : i32
    %137 = arith.cmpi ne, %136, %c0_i32_77 : i32
    %c0_i32_78 = arith.constant 0 : i32
    %138 = arith.cmpi slt, %136, %c0_i32_78 : i32
    %c0_i32_79 = arith.constant 0 : i32
    %139 = arith.cmpi slt, %135, %c0_i32_79 : i32
    %140 = arith.xori %138, %139 : i1
    %141 = arith.andi %140, %137 : i1
    %142 = arith.addi %136, %135 : i32
    %143 = arith.select %141, %142, %136 : i32
    %c0_i32_80 = arith.constant 0 : i32
    %144 = tpu.memref_slice %arg2[%133, %c0_i32_80] : memref<64x32xf32, #tpu.memory_space<any>> -> memref<1x32xf32, #tpu.memory_space<any>>
    %c0_i32_81 = arith.constant 0 : i32
    %145 = tpu.memref_slice %arg4[%128, %c0_i32_81] : memref<16x32xf32, #tpu.memory_space<vmem>> -> memref<1x32xf32, #tpu.memory_space<vmem>>
    %146 = tpu.memref_slice %arg5[%143] : memref<8x!tpu.dma_semaphore, #tpu.memory_space<semaphore_mem>> -> memref<1x!tpu.dma_semaphore, #tpu.memory_space<semaphore_mem>>
    %147 = tpu.memref_squeeze %146 : memref<1x!tpu.dma_semaphore, #tpu.memory_space<semaphore_mem>> -> memref<!tpu.dma_semaphore, #tpu.memory_space<semaphore_mem>>
    tpu.enqueue_dma source(%144 : memref<1x32xf32, #tpu.memory_space<any>>) target(%145 : memref<1x32xf32, #tpu.memory_space<vmem>>) target_semaphore(%147 : memref<!tpu.dma_semaphore, #tpu.memory_space<semaphore_mem>>)
    %c7_i32 = arith.constant 7 : i32
    %c1_i32_82 = arith.constant 1 : i32
    %148 = arith.muli %c7_i32, %c1_i32_82 : i32
    %c0_i32_83 = arith.constant 0 : i32
    %149 = arith.addi %c0_i32_83, %148 : i32
    %150 = arith.addi %0, %149 : i32
    %151 = arith.index_cast %150 : i32 to index
    %152 = memref.load %arg1[%151] : memref<16xi32, #tpu.memory_space<smem>>
    %c0_i32_84 = arith.constant 0 : i32
    %c63_i32_85 = arith.constant 63 : i32
    %153 = arith.maxsi %c0_i32_84, %152 : i32
    %154 = arith.minsi %c63_i32_85, %153 : i32
    %c8_i32_86 = arith.constant 8 : i32
    %c0_i32_87 = arith.constant 0 : i32
    %155 = arith.cmpi eq, %c8_i32_86, %c0_i32_87 : i32
    %c1_i32_88 = arith.constant 1 : i32
    %156 = arith.select %155, %c1_i32_88, %c8_i32_86 : i32
    %157 = arith.remsi %149, %156 : i32
    %c0_i32_89 = arith.constant 0 : i32
    %158 = arith.cmpi ne, %157, %c0_i32_89 : i32
    %c0_i32_90 = arith.constant 0 : i32
    %159 = arith.cmpi slt, %157, %c0_i32_90 : i32
    %c0_i32_91 = arith.constant 0 : i32
    %160 = arith.cmpi slt, %156, %c0_i32_91 : i32
    %161 = arith.xori %159, %160 : i1
    %162 = arith.andi %161, %158 : i1
    %163 = arith.addi %157, %156 : i32
    %164 = arith.select %162, %163, %157 : i32
    %c0_i32_92 = arith.constant 0 : i32
    %165 = tpu.memref_slice %arg2[%154, %c0_i32_92] : memref<64x32xf32, #tpu.memory_space<any>> -> memref<1x32xf32, #tpu.memory_space<any>>
    %c0_i32_93 = arith.constant 0 : i32
    %166 = tpu.memref_slice %arg4[%149, %c0_i32_93] : memref<16x32xf32, #tpu.memory_space<vmem>> -> memref<1x32xf32, #tpu.memory_space<vmem>>
    %167 = tpu.memref_slice %arg5[%164] : memref<8x!tpu.dma_semaphore, #tpu.memory_space<semaphore_mem>> -> memref<1x!tpu.dma_semaphore, #tpu.memory_space<semaphore_mem>>
    %168 = tpu.memref_squeeze %167 : memref<1x!tpu.dma_semaphore, #tpu.memory_space<semaphore_mem>> -> memref<!tpu.dma_semaphore, #tpu.memory_space<semaphore_mem>>
    tpu.enqueue_dma source(%165 : memref<1x32xf32, #tpu.memory_space<any>>) target(%166 : memref<1x32xf32, #tpu.memory_space<vmem>>) target_semaphore(%168 : memref<!tpu.dma_semaphore, #tpu.memory_space<semaphore_mem>>)
    %c8_i32_94 = arith.constant 8 : i32
    %c0_i32_95 = arith.constant 0 : i32
    %c8_i32_96 = arith.constant 8 : i32
    %169 = arith.addi %c0_i32_95, %c8_i32_96 : i32
    %c1_i32_97 = arith.constant 1 : i32
    scf.for %arg6 = %c0_i32_95 to %169 step %c1_i32_97  : i32 {
      %c1_i32_199 = arith.constant 1 : i32
      %300 = arith.muli %arg6, %c1_i32_199 : i32
      %c0_i32_200 = arith.constant 0 : i32
      %301 = arith.addi %c0_i32_200, %300 : i32
      %c8_i32_201 = arith.constant 8 : i32
      %c0_i32_202 = arith.constant 0 : i32
      %302 = arith.cmpi eq, %c8_i32_201, %c0_i32_202 : i32
      %c1_i32_203 = arith.constant 1 : i32
      %303 = arith.select %302, %c1_i32_203, %c8_i32_201 : i32
      %304 = arith.remsi %301, %303 : i32
      %c0_i32_204 = arith.constant 0 : i32
      %305 = arith.cmpi ne, %304, %c0_i32_204 : i32
      %c0_i32_205 = arith.constant 0 : i32
      %306 = arith.cmpi slt, %304, %c0_i32_205 : i32
      %c0_i32_206 = arith.constant 0 : i32
      %307 = arith.cmpi slt, %303, %c0_i32_206 : i32
      %308 = arith.xori %306, %307 : i1
      %309 = arith.andi %308, %305 : i1
      %310 = arith.addi %304, %303 : i32
      %311 = arith.select %309, %310, %304 : i32
      %c0_i32_207 = arith.constant 0 : i32
      %c0_i32_208 = arith.constant 0 : i32
      %312 = tpu.memref_slice %arg2[%c0_i32_207, %c0_i32_208] : memref<64x32xf32, #tpu.memory_space<any>> -> memref<1x32xf32, #tpu.memory_space<any>>
      %c0_i32_209 = arith.constant 0 : i32
      %313 = tpu.memref_slice %arg4[%301, %c0_i32_209] : memref<16x32xf32, #tpu.memory_space<vmem>> -> memref<1x32xf32, #tpu.memory_space<vmem>>
      %314 = tpu.memref_slice %arg5[%311] : memref<8x!tpu.dma_semaphore, #tpu.memory_space<semaphore_mem>> -> memref<1x!tpu.dma_semaphore, #tpu.memory_space<semaphore_mem>>
      %315 = tpu.memref_squeeze %314 : memref<1x!tpu.dma_semaphore, #tpu.memory_space<semaphore_mem>> -> memref<!tpu.dma_semaphore, #tpu.memory_space<semaphore_mem>>
      tpu.wait_dma2 semaphore(%315 : memref<!tpu.dma_semaphore, #tpu.memory_space<semaphore_mem>>) src(%312 : memref<1x32xf32, #tpu.memory_space<any>>) dst(%313 : memref<1x32xf32, #tpu.memory_space<vmem>>)
      %c8_i32_210 = arith.constant 8 : i32
      %316 = arith.addi %301, %c8_i32_210 : i32
      %317 = arith.addi %0, %316 : i32
      %318 = arith.index_cast %317 : i32 to index
      %319 = memref.load %arg1[%318] : memref<16xi32, #tpu.memory_space<smem>>
      %c0_i32_211 = arith.constant 0 : i32
      %c63_i32_212 = arith.constant 63 : i32
      %320 = arith.maxsi %c0_i32_211, %319 : i32
      %321 = arith.minsi %c63_i32_212, %320 : i32
      %c8_i32_213 = arith.constant 8 : i32
      %c0_i32_214 = arith.constant 0 : i32
      %322 = arith.cmpi eq, %c8_i32_213, %c0_i32_214 : i32
      %c1_i32_215 = arith.constant 1 : i32
      %323 = arith.select %322, %c1_i32_215, %c8_i32_213 : i32
      %324 = arith.remsi %316, %323 : i32
      %c0_i32_216 = arith.constant 0 : i32
      %325 = arith.cmpi ne, %324, %c0_i32_216 : i32
      %c0_i32_217 = arith.constant 0 : i32
      %326 = arith.cmpi slt, %324, %c0_i32_217 : i32
      %c0_i32_218 = arith.constant 0 : i32
      %327 = arith.cmpi slt, %323, %c0_i32_218 : i32
      %328 = arith.xori %326, %327 : i1
      %329 = arith.andi %328, %325 : i1
      %330 = arith.addi %324, %323 : i32
      %331 = arith.select %329, %330, %324 : i32
      %c0_i32_219 = arith.constant 0 : i32
      %332 = tpu.memref_slice %arg2[%321, %c0_i32_219] : memref<64x32xf32, #tpu.memory_space<any>> -> memref<1x32xf32, #tpu.memory_space<any>>
      %c0_i32_220 = arith.constant 0 : i32
      %333 = tpu.memref_slice %arg4[%316, %c0_i32_220] : memref<16x32xf32, #tpu.memory_space<vmem>> -> memref<1x32xf32, #tpu.memory_space<vmem>>
      %334 = tpu.memref_slice %arg5[%331] : memref<8x!tpu.dma_semaphore, #tpu.memory_space<semaphore_mem>> -> memref<1x!tpu.dma_semaphore, #tpu.memory_space<semaphore_mem>>
      %335 = tpu.memref_squeeze %334 : memref<1x!tpu.dma_semaphore, #tpu.memory_space<semaphore_mem>> -> memref<!tpu.dma_semaphore, #tpu.memory_space<semaphore_mem>>
      tpu.enqueue_dma source(%332 : memref<1x32xf32, #tpu.memory_space<any>>) target(%333 : memref<1x32xf32, #tpu.memory_space<vmem>>) target_semaphore(%335 : memref<!tpu.dma_semaphore, #tpu.memory_space<semaphore_mem>>)
    }
    %c8_i32_98 = arith.constant 8 : i32
    %c0_i32_99 = arith.constant 0 : i32
    %c1_i32_100 = arith.constant 1 : i32
    %170 = arith.muli %c0_i32_99, %c1_i32_100 : i32
    %c8_i32_101 = arith.constant 8 : i32
    %171 = arith.addi %c8_i32_101, %170 : i32
    %c8_i32_102 = arith.constant 8 : i32
    %c0_i32_103 = arith.constant 0 : i32
    %172 = arith.cmpi eq, %c8_i32_102, %c0_i32_103 : i32
    %c1_i32_104 = arith.constant 1 : i32
    %173 = arith.select %172, %c1_i32_104, %c8_i32_102 : i32
    %174 = arith.remsi %171, %173 : i32
    %c0_i32_105 = arith.constant 0 : i32
    %175 = arith.cmpi ne, %174, %c0_i32_105 : i32
    %c0_i32_106 = arith.constant 0 : i32
    %176 = arith.cmpi slt, %174, %c0_i32_106 : i32
    %c0_i32_107 = arith.constant 0 : i32
    %177 = arith.cmpi slt, %173, %c0_i32_107 : i32
    %178 = arith.xori %176, %177 : i1
    %179 = arith.andi %178, %175 : i1
    %180 = arith.addi %174, %173 : i32
    %181 = arith.select %179, %180, %174 : i32
    %c0_i32_108 = arith.constant 0 : i32
    %c0_i32_109 = arith.constant 0 : i32
    %182 = tpu.memref_slice %arg2[%c0_i32_108, %c0_i32_109] : memref<64x32xf32, #tpu.memory_space<any>> -> memref<1x32xf32, #tpu.memory_space<any>>
    %c0_i32_110 = arith.constant 0 : i32
    %183 = tpu.memref_slice %arg4[%171, %c0_i32_110] : memref<16x32xf32, #tpu.memory_space<vmem>> -> memref<1x32xf32, #tpu.memory_space<vmem>>
    %184 = tpu.memref_slice %arg5[%181] : memref<8x!tpu.dma_semaphore, #tpu.memory_space<semaphore_mem>> -> memref<1x!tpu.dma_semaphore, #tpu.memory_space<semaphore_mem>>
    %185 = tpu.memref_squeeze %184 : memref<1x!tpu.dma_semaphore, #tpu.memory_space<semaphore_mem>> -> memref<!tpu.dma_semaphore, #tpu.memory_space<semaphore_mem>>
    tpu.wait_dma2 semaphore(%185 : memref<!tpu.dma_semaphore, #tpu.memory_space<semaphore_mem>>) src(%182 : memref<1x32xf32, #tpu.memory_space<any>>) dst(%183 : memref<1x32xf32, #tpu.memory_space<vmem>>)
    %c1_i32_111 = arith.constant 1 : i32
    %c1_i32_112 = arith.constant 1 : i32
    %186 = arith.muli %c1_i32_111, %c1_i32_112 : i32
    %c8_i32_113 = arith.constant 8 : i32
    %187 = arith.addi %c8_i32_113, %186 : i32
    %c8_i32_114 = arith.constant 8 : i32
    %c0_i32_115 = arith.constant 0 : i32
    %188 = arith.cmpi eq, %c8_i32_114, %c0_i32_115 : i32
    %c1_i32_116 = arith.constant 1 : i32
    %189 = arith.select %188, %c1_i32_116, %c8_i32_114 : i32
    %190 = arith.remsi %187, %189 : i32
    %c0_i32_117 = arith.constant 0 : i32
    %191 = arith.cmpi ne, %190, %c0_i32_117 : i32
    %c0_i32_118 = arith.constant 0 : i32
    %192 = arith.cmpi slt, %190, %c0_i32_118 : i32
    %c0_i32_119 = arith.constant 0 : i32
    %193 = arith.cmpi slt, %189, %c0_i32_119 : i32
    %194 = arith.xori %192, %193 : i1
    %195 = arith.andi %194, %191 : i1
    %196 = arith.addi %190, %189 : i32
    %197 = arith.select %195, %196, %190 : i32
    %c0_i32_120 = arith.constant 0 : i32
    %c0_i32_121 = arith.constant 0 : i32
    %198 = tpu.memref_slice %arg2[%c0_i32_120, %c0_i32_121] : memref<64x32xf32, #tpu.memory_space<any>> -> memref<1x32xf32, #tpu.memory_space<any>>
    %c0_i32_122 = arith.constant 0 : i32
    %199 = tpu.memref_slice %arg4[%187, %c0_i32_122] : memref<16x32xf32, #tpu.memory_space<vmem>> -> memref<1x32xf32, #tpu.memory_space<vmem>>
    %200 = tpu.memref_slice %arg5[%197] : memref<8x!tpu.dma_semaphore, #tpu.memory_space<semaphore_mem>> -> memref<1x!tpu.dma_semaphore, #tpu.memory_space<semaphore_mem>>
    %201 = tpu.memref_squeeze %200 : memref<1x!tpu.dma_semaphore, #tpu.memory_space<semaphore_mem>> -> memref<!tpu.dma_semaphore, #tpu.memory_space<semaphore_mem>>
    tpu.wait_dma2 semaphore(%201 : memref<!tpu.dma_semaphore, #tpu.memory_space<semaphore_mem>>) src(%198 : memref<1x32xf32, #tpu.memory_space<any>>) dst(%199 : memref<1x32xf32, #tpu.memory_space<vmem>>)
    %c2_i32_123 = arith.constant 2 : i32
    %c1_i32_124 = arith.constant 1 : i32
    %202 = arith.muli %c2_i32_123, %c1_i32_124 : i32
    %c8_i32_125 = arith.constant 8 : i32
    %203 = arith.addi %c8_i32_125, %202 : i32
    %c8_i32_126 = arith.constant 8 : i32
    %c0_i32_127 = arith.constant 0 : i32
    %204 = arith.cmpi eq, %c8_i32_126, %c0_i32_127 : i32
    %c1_i32_128 = arith.constant 1 : i32
    %205 = arith.select %204, %c1_i32_128, %c8_i32_126 : i32
    %206 = arith.remsi %203, %205 : i32
    %c0_i32_129 = arith.constant 0 : i32
    %207 = arith.cmpi ne, %206, %c0_i32_129 : i32
    %c0_i32_130 = arith.constant 0 : i32
    %208 = arith.cmpi slt, %206, %c0_i32_130 : i32
    %c0_i32_131 = arith.constant 0 : i32
    %209 = arith.cmpi slt, %205, %c0_i32_131 : i32
    %210 = arith.xori %208, %209 : i1
    %211 = arith.andi %210, %207 : i1
    %212 = arith.addi %206, %205 : i32
    %213 = arith.select %211, %212, %206 : i32
    %c0_i32_132 = arith.constant 0 : i32
    %c0_i32_133 = arith.constant 0 : i32
    %214 = tpu.memref_slice %arg2[%c0_i32_132, %c0_i32_133] : memref<64x32xf32, #tpu.memory_space<any>> -> memref<1x32xf32, #tpu.memory_space<any>>
    %c0_i32_134 = arith.constant 0 : i32
    %215 = tpu.memref_slice %arg4[%203, %c0_i32_134] : memref<16x32xf32, #tpu.memory_space<vmem>> -> memref<1x32xf32, #tpu.memory_space<vmem>>
    %216 = tpu.memref_slice %arg5[%213] : memref<8x!tpu.dma_semaphore, #tpu.memory_space<semaphore_mem>> -> memref<1x!tpu.dma_semaphore, #tpu.memory_space<semaphore_mem>>
    %217 = tpu.memref_squeeze %216 : memref<1x!tpu.dma_semaphore, #tpu.memory_space<semaphore_mem>> -> memref<!tpu.dma_semaphore, #tpu.memory_space<semaphore_mem>>
    tpu.wait_dma2 semaphore(%217 : memref<!tpu.dma_semaphore, #tpu.memory_space<semaphore_mem>>) src(%214 : memref<1x32xf32, #tpu.memory_space<any>>) dst(%215 : memref<1x32xf32, #tpu.memory_space<vmem>>)
    %c3_i32_135 = arith.constant 3 : i32
    %c1_i32_136 = arith.constant 1 : i32
    %218 = arith.muli %c3_i32_135, %c1_i32_136 : i32
    %c8_i32_137 = arith.constant 8 : i32
    %219 = arith.addi %c8_i32_137, %218 : i32
    %c8_i32_138 = arith.constant 8 : i32
    %c0_i32_139 = arith.constant 0 : i32
    %220 = arith.cmpi eq, %c8_i32_138, %c0_i32_139 : i32
    %c1_i32_140 = arith.constant 1 : i32
    %221 = arith.select %220, %c1_i32_140, %c8_i32_138 : i32
    %222 = arith.remsi %219, %221 : i32
    %c0_i32_141 = arith.constant 0 : i32
    %223 = arith.cmpi ne, %222, %c0_i32_141 : i32
    %c0_i32_142 = arith.constant 0 : i32
    %224 = arith.cmpi slt, %222, %c0_i32_142 : i32
    %c0_i32_143 = arith.constant 0 : i32
    %225 = arith.cmpi slt, %221, %c0_i32_143 : i32
    %226 = arith.xori %224, %225 : i1
    %227 = arith.andi %226, %223 : i1
    %228 = arith.addi %222, %221 : i32
    %229 = arith.select %227, %228, %222 : i32
    %c0_i32_144 = arith.constant 0 : i32
    %c0_i32_145 = arith.constant 0 : i32
    %230 = tpu.memref_slice %arg2[%c0_i32_144, %c0_i32_145] : memref<64x32xf32, #tpu.memory_space<any>> -> memref<1x32xf32, #tpu.memory_space<any>>
    %c0_i32_146 = arith.constant 0 : i32
    %231 = tpu.memref_slice %arg4[%219, %c0_i32_146] : memref<16x32xf32, #tpu.memory_space<vmem>> -> memref<1x32xf32, #tpu.memory_space<vmem>>
    %232 = tpu.memref_slice %arg5[%229] : memref<8x!tpu.dma_semaphore, #tpu.memory_space<semaphore_mem>> -> memref<1x!tpu.dma_semaphore, #tpu.memory_space<semaphore_mem>>
    %233 = tpu.memref_squeeze %232 : memref<1x!tpu.dma_semaphore, #tpu.memory_space<semaphore_mem>> -> memref<!tpu.dma_semaphore, #tpu.memory_space<semaphore_mem>>
    tpu.wait_dma2 semaphore(%233 : memref<!tpu.dma_semaphore, #tpu.memory_space<semaphore_mem>>) src(%230 : memref<1x32xf32, #tpu.memory_space<any>>) dst(%231 : memref<1x32xf32, #tpu.memory_space<vmem>>)
    %c4_i32_147 = arith.constant 4 : i32
    %c1_i32_148 = arith.constant 1 : i32
    %234 = arith.muli %c4_i32_147, %c1_i32_148 : i32
    %c8_i32_149 = arith.constant 8 : i32
    %235 = arith.addi %c8_i32_149, %234 : i32
    %c8_i32_150 = arith.constant 8 : i32
    %c0_i32_151 = arith.constant 0 : i32
    %236 = arith.cmpi eq, %c8_i32_150, %c0_i32_151 : i32
    %c1_i32_152 = arith.constant 1 : i32
    %237 = arith.select %236, %c1_i32_152, %c8_i32_150 : i32
    %238 = arith.remsi %235, %237 : i32
    %c0_i32_153 = arith.constant 0 : i32
    %239 = arith.cmpi ne, %238, %c0_i32_153 : i32
    %c0_i32_154 = arith.constant 0 : i32
    %240 = arith.cmpi slt, %238, %c0_i32_154 : i32
    %c0_i32_155 = arith.constant 0 : i32
    %241 = arith.cmpi slt, %237, %c0_i32_155 : i32
    %242 = arith.xori %240, %241 : i1
    %243 = arith.andi %242, %239 : i1
    %244 = arith.addi %238, %237 : i32
    %245 = arith.select %243, %244, %238 : i32
    %c0_i32_156 = arith.constant 0 : i32
    %c0_i32_157 = arith.constant 0 : i32
    %246 = tpu.memref_slice %arg2[%c0_i32_156, %c0_i32_157] : memref<64x32xf32, #tpu.memory_space<any>> -> memref<1x32xf32, #tpu.memory_space<any>>
    %c0_i32_158 = arith.constant 0 : i32
    %247 = tpu.memref_slice %arg4[%235, %c0_i32_158] : memref<16x32xf32, #tpu.memory_space<vmem>> -> memref<1x32xf32, #tpu.memory_space<vmem>>
    %248 = tpu.memref_slice %arg5[%245] : memref<8x!tpu.dma_semaphore, #tpu.memory_space<semaphore_mem>> -> memref<1x!tpu.dma_semaphore, #tpu.memory_space<semaphore_mem>>
    %249 = tpu.memref_squeeze %248 : memref<1x!tpu.dma_semaphore, #tpu.memory_space<semaphore_mem>> -> memref<!tpu.dma_semaphore, #tpu.memory_space<semaphore_mem>>
    tpu.wait_dma2 semaphore(%249 : memref<!tpu.dma_semaphore, #tpu.memory_space<semaphore_mem>>) src(%246 : memref<1x32xf32, #tpu.memory_space<any>>) dst(%247 : memref<1x32xf32, #tpu.memory_space<vmem>>)
    %c5_i32_159 = arith.constant 5 : i32
    %c1_i32_160 = arith.constant 1 : i32
    %250 = arith.muli %c5_i32_159, %c1_i32_160 : i32
    %c8_i32_161 = arith.constant 8 : i32
    %251 = arith.addi %c8_i32_161, %250 : i32
    %c8_i32_162 = arith.constant 8 : i32
    %c0_i32_163 = arith.constant 0 : i32
    %252 = arith.cmpi eq, %c8_i32_162, %c0_i32_163 : i32
    %c1_i32_164 = arith.constant 1 : i32
    %253 = arith.select %252, %c1_i32_164, %c8_i32_162 : i32
    %254 = arith.remsi %251, %253 : i32
    %c0_i32_165 = arith.constant 0 : i32
    %255 = arith.cmpi ne, %254, %c0_i32_165 : i32
    %c0_i32_166 = arith.constant 0 : i32
    %256 = arith.cmpi slt, %254, %c0_i32_166 : i32
    %c0_i32_167 = arith.constant 0 : i32
    %257 = arith.cmpi slt, %253, %c0_i32_167 : i32
    %258 = arith.xori %256, %257 : i1
    %259 = arith.andi %258, %255 : i1
    %260 = arith.addi %254, %253 : i32
    %261 = arith.select %259, %260, %254 : i32
    %c0_i32_168 = arith.constant 0 : i32
    %c0_i32_169 = arith.constant 0 : i32
    %262 = tpu.memref_slice %arg2[%c0_i32_168, %c0_i32_169] : memref<64x32xf32, #tpu.memory_space<any>> -> memref<1x32xf32, #tpu.memory_space<any>>
    %c0_i32_170 = arith.constant 0 : i32
    %263 = tpu.memref_slice %arg4[%251, %c0_i32_170] : memref<16x32xf32, #tpu.memory_space<vmem>> -> memref<1x32xf32, #tpu.memory_space<vmem>>
    %264 = tpu.memref_slice %arg5[%261] : memref<8x!tpu.dma_semaphore, #tpu.memory_space<semaphore_mem>> -> memref<1x!tpu.dma_semaphore, #tpu.memory_space<semaphore_mem>>
    %265 = tpu.memref_squeeze %264 : memref<1x!tpu.dma_semaphore, #tpu.memory_space<semaphore_mem>> -> memref<!tpu.dma_semaphore, #tpu.memory_space<semaphore_mem>>
    tpu.wait_dma2 semaphore(%265 : memref<!tpu.dma_semaphore, #tpu.memory_space<semaphore_mem>>) src(%262 : memref<1x32xf32, #tpu.memory_space<any>>) dst(%263 : memref<1x32xf32, #tpu.memory_space<vmem>>)
    %c6_i32_171 = arith.constant 6 : i32
    %c1_i32_172 = arith.constant 1 : i32
    %266 = arith.muli %c6_i32_171, %c1_i32_172 : i32
    %c8_i32_173 = arith.constant 8 : i32
    %267 = arith.addi %c8_i32_173, %266 : i32
    %c8_i32_174 = arith.constant 8 : i32
    %c0_i32_175 = arith.constant 0 : i32
    %268 = arith.cmpi eq, %c8_i32_174, %c0_i32_175 : i32
    %c1_i32_176 = arith.constant 1 : i32
    %269 = arith.select %268, %c1_i32_176, %c8_i32_174 : i32
    %270 = arith.remsi %267, %269 : i32
    %c0_i32_177 = arith.constant 0 : i32
    %271 = arith.cmpi ne, %270, %c0_i32_177 : i32
    %c0_i32_178 = arith.constant 0 : i32
    %272 = arith.cmpi slt, %270, %c0_i32_178 : i32
    %c0_i32_179 = arith.constant 0 : i32
    %273 = arith.cmpi slt, %269, %c0_i32_179 : i32
    %274 = arith.xori %272, %273 : i1
    %275 = arith.andi %274, %271 : i1
    %276 = arith.addi %270, %269 : i32
    %277 = arith.select %275, %276, %270 : i32
    %c0_i32_180 = arith.constant 0 : i32
    %c0_i32_181 = arith.constant 0 : i32
    %278 = tpu.memref_slice %arg2[%c0_i32_180, %c0_i32_181] : memref<64x32xf32, #tpu.memory_space<any>> -> memref<1x32xf32, #tpu.memory_space<any>>
    %c0_i32_182 = arith.constant 0 : i32
    %279 = tpu.memref_slice %arg4[%267, %c0_i32_182] : memref<16x32xf32, #tpu.memory_space<vmem>> -> memref<1x32xf32, #tpu.memory_space<vmem>>
    %280 = tpu.memref_slice %arg5[%277] : memref<8x!tpu.dma_semaphore, #tpu.memory_space<semaphore_mem>> -> memref<1x!tpu.dma_semaphore, #tpu.memory_space<semaphore_mem>>
    %281 = tpu.memref_squeeze %280 : memref<1x!tpu.dma_semaphore, #tpu.memory_space<semaphore_mem>> -> memref<!tpu.dma_semaphore, #tpu.memory_space<semaphore_mem>>
    tpu.wait_dma2 semaphore(%281 : memref<!tpu.dma_semaphore, #tpu.memory_space<semaphore_mem>>) src(%278 : memref<1x32xf32, #tpu.memory_space<any>>) dst(%279 : memref<1x32xf32, #tpu.memory_space<vmem>>)
    %c7_i32_183 = arith.constant 7 : i32
    %c1_i32_184 = arith.constant 1 : i32
    %282 = arith.muli %c7_i32_183, %c1_i32_184 : i32
    %c8_i32_185 = arith.constant 8 : i32
    %283 = arith.addi %c8_i32_185, %282 : i32
    %c8_i32_186 = arith.constant 8 : i32
    %c0_i32_187 = arith.constant 0 : i32
    %284 = arith.cmpi eq, %c8_i32_186, %c0_i32_187 : i32
    %c1_i32_188 = arith.constant 1 : i32
    %285 = arith.select %284, %c1_i32_188, %c8_i32_186 : i32
    %286 = arith.remsi %283, %285 : i32
    %c0_i32_189 = arith.constant 0 : i32
    %287 = arith.cmpi ne, %286, %c0_i32_189 : i32
    %c0_i32_190 = arith.constant 0 : i32
    %288 = arith.cmpi slt, %286, %c0_i32_190 : i32
    %c0_i32_191 = arith.constant 0 : i32
    %289 = arith.cmpi slt, %285, %c0_i32_191 : i32
    %290 = arith.xori %288, %289 : i1
    %291 = arith.andi %290, %287 : i1
    %292 = arith.addi %286, %285 : i32
    %293 = arith.select %291, %292, %286 : i32
    %c0_i32_192 = arith.constant 0 : i32
    %c0_i32_193 = arith.constant 0 : i32
    %294 = tpu.memref_slice %arg2[%c0_i32_192, %c0_i32_193] : memref<64x32xf32, #tpu.memory_space<any>> -> memref<1x32xf32, #tpu.memory_space<any>>
    %c0_i32_194 = arith.constant 0 : i32
    %295 = tpu.memref_slice %arg4[%283, %c0_i32_194] : memref<16x32xf32, #tpu.memory_space<vmem>> -> memref<1x32xf32, #tpu.memory_space<vmem>>
    %296 = tpu.memref_slice %arg5[%293] : memref<8x!tpu.dma_semaphore, #tpu.memory_space<semaphore_mem>> -> memref<1x!tpu.dma_semaphore, #tpu.memory_space<semaphore_mem>>
    %297 = tpu.memref_squeeze %296 : memref<1x!tpu.dma_semaphore, #tpu.memory_space<semaphore_mem>> -> memref<!tpu.dma_semaphore, #tpu.memory_space<semaphore_mem>>
    tpu.wait_dma2 semaphore(%297 : memref<!tpu.dma_semaphore, #tpu.memory_space<semaphore_mem>>) src(%294 : memref<1x32xf32, #tpu.memory_space<any>>) dst(%295 : memref<1x32xf32, #tpu.memory_space<vmem>>)
    %c8_i32_195 = arith.constant 8 : i32
    %c0 = arith.constant 0 : index
    %c0_196 = arith.constant 0 : index
    %298 = vector.load %arg4[%c0, %c0_196] : memref<16x32xf32, #tpu.memory_space<vmem>>, vector<16x32xf32>
    %c0_197 = arith.constant 0 : index
    %c0_198 = arith.constant 0 : index
    %299 = vector.load %arg3[%c0_197, %c0_198] : memref<16x32xf32, #tpu.memory_space<vmem>>, vector<16x32xf32>
    tpu.vector_store %arg3[%c0_197, %c0_198], %298 {strides = array<i32>} : memref<16x32xf32, #tpu.memory_space<vmem>>, vector<16x32xf32>,
    return
  }
  func.func @transform_1(%arg0: i32, %arg1: memref<16xi32, #tpu.memory_space<smem>>) -> (i32, i32) {
    %c0_i32 = arith.constant 0 : i32
    %c0_i32_0 = arith.constant 0 : i32
    return %arg0, %c0_i32 : i32, i32
  }
}

</mosaic_0001>

<llo_original>
// kernel: tpu_custom_call.1
$region0: #{tpu_custom_call.1}
  #allocation0 [shape = 'u32[]', space=smem, size = 0x4, offset = 0x4, fixed_abs, tag = 'smem constant byte address 0x4 - core index']
  #allocation1 [shape = 'u32[144,128]{1,0:T(1,128)}', space=vmem, size = 0x12000, scoped, tag = 'internal scratch']
  #allocation2 [shape = 'f32[16,32]{1,0:T(8,128)}', space=vmem, size = 0x2000, scoped, tag = 'scratch operand']
  #allocation3 [shape = 's32[8]{0}', space=sflag, size = 0x20, scoped, tag = 'scratch operand']
  #allocation4 [shape = 's32[1]{0}', space=sflag, size = 0x4, scoped, tag = 'scoped memory for tpu_custom_call.1']
  #allocation5 [shape = 'u8[512]{0}', space=smem, size = 0x200, scoped, tag = 'prefetched SMEM operand 0']
  #allocation8 [shape = 's32[]', space=sflag, size = 0x4, offset = 0, fixed_abs, tag = 'sflag constant byte address 0x0 - dummy sync flag']
  #allocation9 [shape = 's32[]', space=sflag, size = 0x4, offset = 0, fixed_abs, tag = 'sflag constant byte address 0x0 - dummy sync flag']
  #allocation10 [shape = 's32[]', space=sflag, size = 0x4, offset = 0, fixed_abs, tag = 'sflag constant byte address 0x0 - dummy sync flag']
  #allocation11 [shape = 's32[]', space=sflag, size = 0x4, offset = 0, fixed_abs, tag = 'sflag constant byte address 0x0 - dummy sync flag']
  #allocation12 [shape = 's32[]', space=sflag, size = 0x4, offset = 0, fixed_abs, tag = 'sflag constant byte address 0x0 - dummy sync flag']
  #allocation13 [shape = 's32[]', space=sflag, size = 0x4, offset = 0, fixed_abs, tag = 'sflag constant byte address 0x0 - dummy sync flag']
  #allocation14 [shape = 's32[]', space=sflag, size = 0x4, offset = 0, fixed_abs, tag = 'sflag constant byte address 0x0 - dummy sync flag']
  #allocation15 [shape = 's32[]', space=sflag, size = 0x4, offset = 0, fixed_abs, tag = 'sflag constant byte address 0x0 - dummy sync flag']
  #allocation16 [shape = 's32[]', space=sflag, size = 0x4, offset = 0, fixed_abs, tag = 'sflag constant byte address 0x0 - dummy sync flag']
  %s0 = inlined_call_operand.vmem [shape: s32[16], index: 0, kind: input, shape index: {}]
  %s1 = inlined_call_operand.vmem [shape: f32[64,32], index: 1, kind: input, shape index: {}]
  %s2 = inlined_call_operand.hbm [shape: f32[16,32], index: 2, kind: output, shape index: {}]
  %s3 = sld [smem:[#allocation0]]
  $region287: #{tpu_custom_call.1} parent=0
    _
  %s5 = ssub.s32 1, %s3
  %s6 = scalar_select 0, %s5, %s3
  %s7 = sshll.u32 %s0, 4
  %s8 = int_to_ptr.vmem [resolvable:$true] %s7
  %10 = dma.vmem_to_smem %s8, 16, [#allocation5], [#allocation4]
  %11 = dma.done [#allocation4], 16
  %12 = sfence
  $region1: #{tpu_custom_call.1} parent=0
    #allocation6 [shape = 'u8[8192]{0}', space=vmem, size = 0x2000, scoped, tag = 'output window, operand 0, single buffered']
    #allocation7 [shape = 's32[1]{0}', space=sflag, size = 0x4, scoped, tag = 'scoped memory for tpu_custom_call.1']
    %13 = vsyncpa [#allocation7], 0
    %s14 = smul.u32 0, 16
    %s15 = sld [smem:[#allocation5 + %s14]]
    %p16 = scmp.gt.s32.totalorder %s15, 0
    %s17 = scalar_select %p16, %s15, 0
    %p18 = scmp.lt.s32.totalorder %s17, 63
    %s19 = scalar_select %p18, %s17, 63
    %s20 = scalar_lea.vmem %s1, %s19
    %p22 = scmp.lt.u32.totalorder 1, 8
    %p23 = pneg %p22
    // Predicated region
    $region2: #{tpu_custom_call.1} parent=1 // pred_check
      _
    $region3: #{tpu_custom_call.1} parent=1 // pred_check_branch
      %25 = sbr.rel (%p22) target = $region5
    $region4: #{tpu_custom_call.1} parent=1 // pred_region
      %s40 = sand.u32 1, 7
      %p41 = scmp.eq.s32.totalorder %s40, 0
      %p42 = pneg %p41
      // Predicated region
      $region17: #{tpu_custom_call.1} parent=4 // pred_check
        _
      $region18: #{tpu_custom_call.1} parent=4 // pred_check_branch
        %44 = sbr.rel (%p41) target = $region20
      $region19: #{tpu_custom_call.1} parent=4 // pred_region
        %s45 = sand.u32 1, 7
        %s46 = ssub.s32 1, %s45
        %s47 = scalar_lea.vmem %s20, %s46
        %s48 = ssub.s32 1, %s45
        %s49 = scalar_lea.vmem [#allocation2], %s48
        %s50 = sshllo.u32 0, %s45
        loop: start=0, step=1, limit=1
        $region21: #{tpu_custom_call.1} parent=19 // loop_pre_header
          _
        $region22: #{tpu_custom_call.1} parent=19 // loop_header
          %s52 = sphi 0, %s56
          %p53 = scmp.ge.s32.totalorder %s52, 1
          %s57 = sphi %s47, %s47
          %s58 = sphi %s49, %s49
        $region23: #{tpu_custom_call.1} parent=19 // loop_header_branch
          %55 = sbr.rel (%p53) target = $region27
        $region24: #{tpu_custom_call.1} parent=19 // loop_body
          %v59 = vld [vmem:[%s57] sm:%s50]
          %60 = vst [vmem:[%s58] sm:%s50] %v59
        $region25: #{tpu_custom_call.1} parent=19 // loop_footer
          %s56 = sadd.s32 1, %s52
        $region26: #{tpu_custom_call.1} parent=19 // loop_footer_branch
          %51 = sbr.rel target = $region22
        $region27: #{tpu_custom_call.1} parent=19 // loop_exit
          _
      $region20: #{tpu_custom_call.1} parent=4 // pred_fallthru
        _
    $region5: #{tpu_custom_call.1} parent=1 // pred_fallthru
      _
    // Predicated region
    $region6: #{tpu_custom_call.1} parent=1 // pred_check
      %p26 = pneg %p22
    $region7: #{tpu_custom_call.1} parent=1 // pred_check_branch
      %28 = sbr.rel (%p26) target = $region9
    $region8: #{tpu_custom_call.1} parent=1 // pred_region
      %s29 = sshllo.u32 0, 1
      loop: start=0, step=1, limit=1
      $region10: #{tpu_custom_call.1} parent=8 // loop_pre_header
        _
      $region11: #{tpu_custom_call.1} parent=8 // loop_header
        %s31 = sphi 0, %s35
        %p32 = scmp.ge.s32.totalorder %s31, 1
        %s36 = sphi %s20, %s20
        %s37 = sphi [#allocation2], [#allocation2]
      $region12: #{tpu_custom_call.1} parent=8 // loop_header_branch
        %34 = sbr.rel (%p32) target = $region16
      $region13: #{tpu_custom_call.1} parent=8 // loop_body
        %v38 = vld [vmem:[%s36] sm:%s29]
        %39 = vst [vmem:[%s37] sm:%s29] %v38
      $region14: #{tpu_custom_call.1} parent=8 // loop_footer
        %s35 = sadd.s32 1, %s31
      $region15: #{tpu_custom_call.1} parent=8 // loop_footer_branch
        %30 = sbr.rel target = $region11
      $region16: #{tpu_custom_call.1} parent=8 // loop_exit
        _
    $region9: #{tpu_custom_call.1} parent=1 // pred_fallthru
      _
    // Predicated region
    $region28: #{tpu_custom_call.1} parent=1 // pred_check
      _
    $region29: #{tpu_custom_call.1} parent=1 // pred_check_branch
      %63 = sbr.rel (0) target = $region31
    $region30: #{tpu_custom_call.1} parent=1 // pred_region
      %64 = vsyncadd [#allocation3], 16
    $region31: #{tpu_custom_call.1} parent=1 // pred_fallthru
      _
    %s65 = sadd.s32 %s14, 1
    %s66 = sld [smem:[#allocation5 + %s65]]
    %p67 = scmp.gt.s32.totalorder %s66, 0
    %s68 = scalar_select %p67, %s66, 0
    %p69 = scmp.lt.s32.totalorder %s68, 63
    %s70 = scalar_select %p69, %s68, 63
    %s71 = scalar_lea.vmem %s1, %s70
    %s72 = scalar_lea.vmem [#allocation2], 1
    %s73 = scalar_lea.sflag [#allocation3], 1
    %p75 = scmp.lt.u32.totalorder 1, 8
    %p76 = pneg %p75
    // Predicated region
    $region32: #{tpu_custom_call.1} parent=1 // pred_check
      _
    $region33: #{tpu_custom_call.1} parent=1 // pred_check_branch
      %78 = sbr.rel (%p75) target = $region35
    $region34: #{tpu_custom_call.1} parent=1 // pred_region
      %s93 = sand.u32 1, 7
      %p94 = scmp.eq.s32.totalorder %s93, 0
      %p95 = pneg %p94
      // Predicated region
      $region47: #{tpu_custom_call.1} parent=34 // pred_check
        _
      $region48: #{tpu_custom_call.1} parent=34 // pred_check_branch
        %97 = sbr.rel (%p94) target = $region50
      $region49: #{tpu_custom_call.1} parent=34 // pred_region
        %s98 = sand.u32 1, 7
        %s99 = ssub.s32 1, %s98
        %s100 = scalar_lea.vmem %s71, %s99
        %s101 = ssub.s32 1, %s98
        %s102 = scalar_lea.vmem %s72, %s101 [#allocation2]
        %s103 = sshllo.u32 0, %s98
        loop: start=0, step=1, limit=1
        $region51: #{tpu_custom_call.1} parent=49 // loop_pre_header
          _
        $region52: #{tpu_custom_call.1} parent=49 // loop_header
          %s105 = sphi 0, %s109
          %p106 = scmp.ge.s32.totalorder %s105, 1
          %s110 = sphi %s100, %s100
          %s111 = sphi %s102, %s102
        $region53: #{tpu_custom_call.1} parent=49 // loop_header_branch
          %108 = sbr.rel (%p106) target = $region57
        $region54: #{tpu_custom_call.1} parent=49 // loop_body
          %v112 = vld [vmem:[%s110] sm:%s103]
          %113 = vst [vmem:[%s111] sm:%s103] %v112
        $region55: #{tpu_custom_call.1} parent=49 // loop_footer
          %s109 = sadd.s32 1, %s105
        $region56: #{tpu_custom_call.1} parent=49 // loop_footer_branch
          %104 = sbr.rel target = $region52
        $region57: #{tpu_custom_call.1} parent=49 // loop_exit
          _
      $region50: #{tpu_custom_call.1} parent=34 // pred_fallthru
        _
    $region35: #{tpu_custom_call.1} parent=1 // pred_fallthru
      _
    // Predicated region
    $region36: #{tpu_custom_call.1} parent=1 // pred_check
      %p79 = pneg %p75
    $region37: #{tpu_custom_call.1} parent=1 // pred_check_branch
      %81 = sbr.rel (%p79) target = $region39
    $region38: #{tpu_custom_call.1} parent=1 // pred_region
      %s82 = sshllo.u32 0, 1
      loop: start=0, step=1, limit=1
      $region40: #{tpu_custom_call.1} parent=38 // loop_pre_header
        _
      $region41: #{tpu_custom_call.1} parent=38 // loop_header
        %s84 = sphi 0, %s88
        %p85 = scmp.ge.s32.totalorder %s84, 1
        %s89 = sphi %s71, %s71
        %s90 = sphi %s72, %s72
      $region42: #{tpu_custom_call.1} parent=38 // loop_header_branch
        %87 = sbr.rel (%p85) target = $region46
      $region43: #{tpu_custom_call.1} parent=38 // loop_body
        %v91 = vld [vmem:[%s89] sm:%s82]
        %92 = vst [vmem:[%s90] sm:%s82] %v91
      $region44: #{tpu_custom_call.1} parent=38 // loop_footer
        %s88 = sadd.s32 1, %s84
      $region45: #{tpu_custom_call.1} parent=38 // loop_footer_branch
        %83 = sbr.rel target = $region41
      $region46: #{tpu_custom_call.1} parent=38 // loop_exit
        _
    $region39: #{tpu_custom_call.1} parent=1 // pred_fallthru
      _
    // Predicated region
    $region58: #{tpu_custom_call.1} parent=1 // pred_check
      _
    $region59: #{tpu_custom_call.1} parent=1 // pred_check_branch
      %116 = sbr.rel (0) target = $region61
    $region60: #{tpu_custom_call.1} parent=1 // pred_region
      %117 = vsyncadd %s73, 16
    $region61: #{tpu_custom_call.1} parent=1 // pred_fallthru
      _
    %s118 = sadd.s32 %s14, 2
    %s119 = sld [smem:[#allocation5 + %s118]]
    %p120 = scmp.gt.s32.totalorder %s119, 0
    %s121 = scalar_select %p120, %s119, 0
    %p122 = scmp.lt.s32.totalorder %s121, 63
    %s123 = scalar_select %p122, %s121, 63
    %s124 = scalar_lea.vmem %s1, %s123
    %s125 = scalar_lea.vmem [#allocation2], 2
    %s126 = scalar_lea.sflag [#allocation3], 2
    %p128 = scmp.lt.u32.totalorder 1, 8
    %p129 = pneg %p128
    // Predicated region
    $region62: #{tpu_custom_call.1} parent=1 // pred_check
      _
    $region63: #{tpu_custom_call.1} parent=1 // pred_check_branch
      %131 = sbr.rel (%p128) target = $region65
    $region64: #{tpu_custom_call.1} parent=1 // pred_region
      %s146 = sand.u32 1, 7
      %p147 = scmp.eq.s32.totalorder %s146, 0
      %p148 = pneg %p147
      // Predicated region
      $region77: #{tpu_custom_call.1} parent=64 // pred_check
        _
      $region78: #{tpu_custom_call.1} parent=64 // pred_check_branch
        %150 = sbr.rel (%p147) target = $region80
      $region79: #{tpu_custom_call.1} parent=64 // pred_region
        %s151 = sand.u32 1, 7
        %s152 = ssub.s32 1, %s151
        %s153 = scalar_lea.vmem %s124, %s152
        %s154 = ssub.s32 1, %s151
        %s155 = scalar_lea.vmem %s125, %s154 [#allocation2]
        %s156 = sshllo.u32 0, %s151
        loop: start=0, step=1, limit=1
        $region81: #{tpu_custom_call.1} parent=79 // loop_pre_header
          _
        $region82: #{tpu_custom_call.1} parent=79 // loop_header
          %s158 = sphi 0, %s162
          %p159 = scmp.ge.s32.totalorder %s158, 1
          %s163 = sphi %s153, %s153
          %s164 = sphi %s155, %s155
        $region83: #{tpu_custom_call.1} parent=79 // loop_header_branch
          %161 = sbr.rel (%p159) target = $region87
        $region84: #{tpu_custom_call.1} parent=79 // loop_body
          %v165 = vld [vmem:[%s163] sm:%s156]
          %166 = vst [vmem:[%s164] sm:%s156] %v165
        $region85: #{tpu_custom_call.1} parent=79 // loop_footer
          %s162 = sadd.s32 1, %s158
        $region86: #{tpu_custom_call.1} parent=79 // loop_footer_branch
          %157 = sbr.rel target = $region82
        $region87: #{tpu_custom_call.1} parent=79 // loop_exit
          _
      $region80: #{tpu_custom_call.1} parent=64 // pred_fallthru
        _
    $region65: #{tpu_custom_call.1} parent=1 // pred_fallthru
      _
    // Predicated region
    $region66: #{tpu_custom_call.1} parent=1 // pred_check
      %p132 = pneg %p128
    $region67: #{tpu_custom_call.1} parent=1 // pred_check_branch
      %134 = sbr.rel (%p132) target = $region69
    $region68: #{tpu_custom_call.1} parent=1 // pred_region
      %s135 = sshllo.u32 0, 1
      loop: start=0, step=1, limit=1
      $region70: #{tpu_custom_call.1} parent=68 // loop_pre_header
        _
      $region71: #{tpu_custom_call.1} parent=68 // loop_header
        %s137 = sphi 0, %s141
        %p138 = scmp.ge.s32.totalorder %s137, 1
        %s142 = sphi %s124, %s124
        %s143 = sphi %s125, %s125
      $region72: #{tpu_custom_call.1} parent=68 // loop_header_branch
        %140 = sbr.rel (%p138) target = $region76
      $region73: #{tpu_custom_call.1} parent=68 // loop_body
        %v144 = vld [vmem:[%s142] sm:%s135]
        %145 = vst [vmem:[%s143] sm:%s135] %v144
      $region74: #{tpu_custom_call.1} parent=68 // loop_footer
        %s141 = sadd.s32 1, %s137
      $region75: #{tpu_custom_call.1} parent=68 // loop_footer_branch
        %136 = sbr.rel target = $region71
      $region76: #{tpu_custom_call.1} parent=68 // loop_exit
        _
    $region69: #{tpu_custom_call.1} parent=1 // pred_fallthru
      _
    // Predicated region
    $region88: #{tpu_custom_call.1} parent=1 // pred_check
      _
    $region89: #{tpu_custom_call.1} parent=1 // pred_check_branch
      %169 = sbr.rel (0) target = $region91
    $region90: #{tpu_custom_call.1} parent=1 // pred_region
      %170 = vsyncadd %s126, 16
    $region91: #{tpu_custom_call.1} parent=1 // pred_fallthru
      _
    %s171 = sadd.s32 %s14, 3
    %s172 = sld [smem:[#allocation5 + %s171]]
    %p173 = scmp.gt.s32.totalorder %s172, 0
    %s174 = scalar_select %p173, %s172, 0
    %p175 = scmp.lt.s32.totalorder %s174, 63
    %s176 = scalar_select %p175, %s174, 63
    %s177 = scalar_lea.vmem %s1, %s176
    %s178 = scalar_lea.vmem [#allocation2], 3
    %s179 = scalar_lea.sflag [#allocation3], 3
    %p181 = scmp.lt.u32.totalorder 1, 8
    %p182 = pneg %p181
    // Predicated region
    $region92: #{tpu_custom_call.1} parent=1 // pred_check
      _
    $region93: #{tpu_custom_call.1} parent=1 // pred_check_branch
      %184 = sbr.rel (%p181) target = $region95
    $region94: #{tpu_custom_call.1} parent=1 // pred_region
      %s199 = sand.u32 1, 7
      %p200 = scmp.eq.s32.totalorder %s199, 0
      %p201 = pneg %p200
      // Predicated region
      $region107: #{tpu_custom_call.1} parent=94 // pred_check
        _
      $region108: #{tpu_custom_call.1} parent=94 // pred_check_branch
        %203 = sbr.rel (%p200) target = $region110
      $region109: #{tpu_custom_call.1} parent=94 // pred_region
        %s204 = sand.u32 1, 7
        %s205 = ssub.s32 1, %s204
        %s206 = scalar_lea.vmem %s177, %s205
        %s207 = ssub.s32 1, %s204
        %s208 = scalar_lea.vmem %s178, %s207 [#allocation2]
        %s209 = sshllo.u32 0, %s204
        loop: start=0, step=1, limit=1
        $region111: #{tpu_custom_call.1} parent=109 // loop_pre_header
          _
        $region112: #{tpu_custom_call.1} parent=109 // loop_header
          %s211 = sphi 0, %s215
          %p212 = scmp.ge.s32.totalorder %s211, 1
          %s216 = sphi %s206, %s206
          %s217 = sphi %s208, %s208
        $region113: #{tpu_custom_call.1} parent=109 // loop_header_branch
          %214 = sbr.rel (%p212) target = $region117
        $region114: #{tpu_custom_call.1} parent=109 // loop_body
          %v218 = vld [vmem:[%s216] sm:%s209]
          %219 = vst [vmem:[%s217] sm:%s209] %v218
        $region115: #{tpu_custom_call.1} parent=109 // loop_footer
          %s215 = sadd.s32 1, %s211
        $region116: #{tpu_custom_call.1} parent=109 // loop_footer_branch
          %210 = sbr.rel target = $region112
        $region117: #{tpu_custom_call.1} parent=109 // loop_exit
          _
      $region110: #{tpu_custom_call.1} parent=94 // pred_fallthru
        _
    $region95: #{tpu_custom_call.1} parent=1 // pred_fallthru
      _
    // Predicated region
    $region96: #{tpu_custom_call.1} parent=1 // pred_check
      %p185 = pneg %p181
    $region97: #{tpu_custom_call.1} parent=1 // pred_check_branch
      %187 = sbr.rel (%p185) target = $region99
    $region98: #{tpu_custom_call.1} parent=1 // pred_region
      %s188 = sshllo.u32 0, 1
      loop: start=0, step=1, limit=1
      $region100: #{tpu_custom_call.1} parent=98 // loop_pre_header
        _
      $region101: #{tpu_custom_call.1} parent=98 // loop_header
        %s190 = sphi 0, %s194
        %p191 = scmp.ge.s32.totalorder %s190, 1
        %s195 = sphi %s177, %s177
        %s196 = sphi %s178, %s178
      $region102: #{tpu_custom_call.1} parent=98 // loop_header_branch
        %193 = sbr.rel (%p191) target = $region106
      $region103: #{tpu_custom_call.1} parent=98 // loop_body
        %v197 = vld [vmem:[%s195] sm:%s188]
        %198 = vst [vmem:[%s196] sm:%s188] %v197
      $region104: #{tpu_custom_call.1} parent=98 // loop_footer
        %s194 = sadd.s32 1, %s190
      $region105: #{tpu_custom_call.1} parent=98 // loop_footer_branch
        %189 = sbr.rel target = $region101
      $region106: #{tpu_custom_call.1} parent=98 // loop_exit
        _
    $region99: #{tpu_custom_call.1} parent=1 // pred_fallthru
      _
    // Predicated region
    $region118: #{tpu_custom_call.1} parent=1 // pred_check
      _
    $region119: #{tpu_custom_call.1} parent=1 // pred_check_branch
      %222 = sbr.rel (0) target = $region121
    $region120: #{tpu_custom_call.1} parent=1 // pred_region
      %223 = vsyncadd %s179, 16
    $region121: #{tpu_custom_call.1} parent=1 // pred_fallthru
      _
    %s224 = sadd.s32 %s14, 4
    %s225 = sld [smem:[#allocation5 + %s224]]
    %p226 = scmp.gt.s32.totalorder %s225, 0
    %s227 = scalar_select %p226, %s225, 0
    %p228 = scmp.lt.s32.totalorder %s227, 63
    %s229 = scalar_select %p228, %s227, 63
    %s230 = scalar_lea.vmem %s1, %s229
    %s231 = scalar_lea.vmem [#allocation2], 4
    %s232 = scalar_lea.sflag [#allocation3], 4
    %p234 = scmp.lt.u32.totalorder 1, 8
    %p235 = pneg %p234
    // Predicated region
    $region122: #{tpu_custom_call.1} parent=1 // pred_check
      _
    $region123: #{tpu_custom_call.1} parent=1 // pred_check_branch
      %237 = sbr.rel (%p234) target = $region125
    $region124: #{tpu_custom_call.1} parent=1 // pred_region
      %s252 = sand.u32 1, 7
      %p253 = scmp.eq.s32.totalorder %s252, 0
      %p254 = pneg %p253
      // Predicated region
      $region137: #{tpu_custom_call.1} parent=124 // pred_check
        _
      $region138: #{tpu_custom_call.1} parent=124 // pred_check_branch
        %256 = sbr.rel (%p253) target = $region140
      $region139: #{tpu_custom_call.1} parent=124 // pred_region
        %s257 = sand.u32 1, 7
        %s258 = ssub.s32 1, %s257
        %s259 = scalar_lea.vmem %s230, %s258
        %s260 = ssub.s32 1, %s257
        %s261 = scalar_lea.vmem %s231, %s260 [#allocation2]
        %s262 = sshllo.u32 0, %s257
        loop: start=0, step=1, limit=1
        $region141: #{tpu_custom_call.1} parent=139 // loop_pre_header
          _
        $region142: #{tpu_custom_call.1} parent=139 // loop_header
          %s264 = sphi 0, %s268
          %p265 = scmp.ge.s32.totalorder %s264, 1
          %s269 = sphi %s259, %s259
          %s270 = sphi %s261, %s261
        $region143: #{tpu_custom_call.1} parent=139 // loop_header_branch
          %267 = sbr.rel (%p265) target = $region147
        $region144: #{tpu_custom_call.1} parent=139 // loop_body
          %v271 = vld [vmem:[%s269] sm:%s262]
          %272 = vst [vmem:[%s270] sm:%s262] %v271
        $region145: #{tpu_custom_call.1} parent=139 // loop_footer
          %s268 = sadd.s32 1, %s264
        $region146: #{tpu_custom_call.1} parent=139 // loop_footer_branch
          %263 = sbr.rel target = $region142
        $region147: #{tpu_custom_call.1} parent=139 // loop_exit
          _
      $region140: #{tpu_custom_call.1} parent=124 // pred_fallthru
        _
    $region125: #{tpu_custom_call.1} parent=1 // pred_fallthru
      _
    // Predicated region
    $region126: #{tpu_custom_call.1} parent=1 // pred_check
      %p238 = pneg %p234
    $region127: #{tpu_custom_call.1} parent=1 // pred_check_branch
      %240 = sbr.rel (%p238) target = $region129
    $region128: #{tpu_custom_call.1} parent=1 // pred_region
      %s241 = sshllo.u32 0, 1
      loop: start=0, step=1, limit=1
      $region130: #{tpu_custom_call.1} parent=128 // loop_pre_header
        _
      $region131: #{tpu_custom_call.1} parent=128 // loop_header
        %s243 = sphi 0, %s247
        %p244 = scmp.ge.s32.totalorder %s243, 1
        %s248 = sphi %s230, %s230
        %s249 = sphi %s231, %s231
      $region132: #{tpu_custom_call.1} parent=128 // loop_header_branch
        %246 = sbr.rel (%p244) target = $region136
      $region133: #{tpu_custom_call.1} parent=128 // loop_body
        %v250 = vld [vmem:[%s248] sm:%s241]
        %251 = vst [vmem:[%s249] sm:%s241] %v250
      $region134: #{tpu_custom_call.1} parent=128 // loop_footer
        %s247 = sadd.s32 1, %s243
      $region135: #{tpu_custom_call.1} parent=128 // loop_footer_branch
        %242 = sbr.rel target = $region131
      $region136: #{tpu_custom_call.1} parent=128 // loop_exit
        _
    $region129: #{tpu_custom_call.1} parent=1 // pred_fallthru
      _
    // Predicated region
    $region148: #{tpu_custom_call.1} parent=1 // pred_check
      _
    $region149: #{tpu_custom_call.1} parent=1 // pred_check_branch
      %275 = sbr.rel (0) target = $region151
    $region150: #{tpu_custom_call.1} parent=1 // pred_region
      %276 = vsyncadd %s232, 16
    $region151: #{tpu_custom_call.1} parent=1 // pred_fallthru
      _
    %s277 = sadd.s32 %s14, 5
    %s278 = sld [smem:[#allocation5 + %s277]]
    %p279 = scmp.gt.s32.totalorder %s278, 0
    %s280 = scalar_select %p279, %s278, 0
    %p281 = scmp.lt.s32.totalorder %s280, 63
    %s282 = scalar_select %p281, %s280, 63
    %s283 = scalar_lea.vmem %s1, %s282
    %s284 = scalar_lea.vmem [#allocation2], 5
    %s285 = scalar_lea.sflag [#allocation3], 5
    %p287 = scmp.lt.u32.totalorder 1, 8
    %p288 = pneg %p287
    // Predicated region
    $region152: #{tpu_custom_call.1} parent=1 // pred_check
      _
    $region153: #{tpu_custom_call.1} parent=1 // pred_check_branch
      %290 = sbr.rel (%p287) target = $region155
    $region154: #{tpu_custom_call.1} parent=1 // pred_region
      %s305 = sand.u32 1, 7
      %p306 = scmp.eq.s32.totalorder %s305, 0
      %p307 = pneg %p306
      // Predicated region
      $region167: #{tpu_custom_call.1} parent=154 // pred_check
        _
      $region168: #{tpu_custom_call.1} parent=154 // pred_check_branch
        %309 = sbr.rel (%p306) target = $region170
      $region169: #{tpu_custom_call.1} parent=154 // pred_region
        %s310 = sand.u32 1, 7
        %s311 = ssub.s32 1, %s310
        %s312 = scalar_lea.vmem %s283, %s311
        %s313 = ssub.s32 1, %s310
        %s314 = scalar_lea.vmem %s284, %s313 [#allocation2]
        %s315 = sshllo.u32 0, %s310
        loop: start=0, step=1, limit=1
        $region171: #{tpu_custom_call.1} parent=169 // loop_pre_header
          _
        $region172: #{tpu_custom_call.1} parent=169 // loop_header
          %s317 = sphi 0, %s321
          %p318 = scmp.ge.s32.totalorder %s317, 1
          %s322 = sphi %s312, %s312
          %s323 = sphi %s314, %s314
        $region173: #{tpu_custom_call.1} parent=169 // loop_header_branch
          %320 = sbr.rel (%p318) target = $region177
        $region174: #{tpu_custom_call.1} parent=169 // loop_body
          %v324 = vld [vmem:[%s322] sm:%s315]
          %325 = vst [vmem:[%s323] sm:%s315] %v324
        $region175: #{tpu_custom_call.1} parent=169 // loop_footer
          %s321 = sadd.s32 1, %s317
        $region176: #{tpu_custom_call.1} parent=169 // loop_footer_branch
          %316 = sbr.rel target = $region172
        $region177: #{tpu_custom_call.1} parent=169 // loop_exit
          _
      $region170: #{tpu_custom_call.1} parent=154 // pred_fallthru
        _
    $region155: #{tpu_custom_call.1} parent=1 // pred_fallthru
      _
    // Predicated region
    $region156: #{tpu_custom_call.1} parent=1 // pred_check
      %p291 = pneg %p287
    $region157: #{tpu_custom_call.1} parent=1 // pred_check_branch
      %293 = sbr.rel (%p291) target = $region159
    $region158: #{tpu_custom_call.1} parent=1 // pred_region
      %s294 = sshllo.u32 0, 1
      loop: start=0, step=1, limit=1
      $region160: #{tpu_custom_call.1} parent=158 // loop_pre_header
        _
      $region161: #{tpu_custom_call.1} parent=158 // loop_header
        %s296 = sphi 0, %s300
        %p297 = scmp.ge.s32.totalorder %s296, 1
        %s301 = sphi %s283, %s283
        %s302 = sphi %s284, %s284
      $region162: #{tpu_custom_call.1} parent=158 // loop_header_branch
        %299 = sbr.rel (%p297) target = $region166
      $region163: #{tpu_custom_call.1} parent=158 // loop_body
        %v303 = vld [vmem:[%s301] sm:%s294]
        %304 = vst [vmem:[%s302] sm:%s294] %v303
      $region164: #{tpu_custom_call.1} parent=158 // loop_footer
        %s300 = sadd.s32 1, %s296
      $region165: #{tpu_custom_call.1} parent=158 // loop_footer_branch
        %295 = sbr.rel target = $region161
      $region166: #{tpu_custom_call.1} parent=158 // loop_exit
        _
    $region159: #{tpu_custom_call.1} parent=1 // pred_fallthru
      _
    // Predicated region
    $region178: #{tpu_custom_call.1} parent=1 // pred_check
      _
    $region179: #{tpu_custom_call.1} parent=1 // pred_check_branch
      %328 = sbr.rel (0) target = $region181
    $region180: #{tpu_custom_call.1} parent=1 // pred_region
      %329 = vsyncadd %s285, 16
    $region181: #{tpu_custom_call.1} parent=1 // pred_fallthru
      _
    %s330 = sadd.s32 %s14, 6
    %s331 = sld [smem:[#allocation5 + %s330]]
    %p332 = scmp.gt.s32.totalorder %s331, 0
    %s333 = scalar_select %p332, %s331, 0
    %p334 = scmp.lt.s32.totalorder %s333, 63
    %s335 = scalar_select %p334, %s333, 63
    %s336 = scalar_lea.vmem %s1, %s335
    %s337 = scalar_lea.vmem [#allocation2], 6
    %s338 = scalar_lea.sflag [#allocation3], 6
    %p340 = scmp.lt.u32.totalorder 1, 8
    %p341 = pneg %p340
    // Predicated region
    $region182: #{tpu_custom_call.1} parent=1 // pred_check
      _
    $region183: #{tpu_custom_call.1} parent=1 // pred_check_branch
      %343 = sbr.rel (%p340) target = $region185
    $region184: #{tpu_custom_call.1} parent=1 // pred_region
      %s358 = sand.u32 1, 7
      %p359 = scmp.eq.s32.totalorder %s358, 0
      %p360 = pneg %p359
      // Predicated region
      $region197: #{tpu_custom_call.1} parent=184 // pred_check
        _
      $region198: #{tpu_custom_call.1} parent=184 // pred_check_branch
        %362 = sbr.rel (%p359) target = $region200
      $region199: #{tpu_custom_call.1} parent=184 // pred_region
        %s363 = sand.u32 1, 7
        %s364 = ssub.s32 1, %s363
        %s365 = scalar_lea.vmem %s336, %s364
        %s366 = ssub.s32 1, %s363
        %s367 = scalar_lea.vmem %s337, %s366 [#allocation2]
        %s368 = sshllo.u32 0, %s363
        loop: start=0, step=1, limit=1
        $region201: #{tpu_custom_call.1} parent=199 // loop_pre_header
          _
        $region202: #{tpu_custom_call.1} parent=199 // loop_header
          %s370 = sphi 0, %s374
          %p371 = scmp.ge.s32.totalorder %s370, 1
          %s375 = sphi %s365, %s365
          %s376 = sphi %s367, %s367
        $region203: #{tpu_custom_call.1} parent=199 // loop_header_branch
          %373 = sbr.rel (%p371) target = $region207
        $region204: #{tpu_custom_call.1} parent=199 // loop_body
          %v377 = vld [vmem:[%s375] sm:%s368]
          %378 = vst [vmem:[%s376] sm:%s368] %v377
        $region205: #{tpu_custom_call.1} parent=199 // loop_footer
          %s374 = sadd.s32 1, %s370
        $region206: #{tpu_custom_call.1} parent=199 // loop_footer_branch
          %369 = sbr.rel target = $region202
        $region207: #{tpu_custom_call.1} parent=199 // loop_exit
          _
      $region200: #{tpu_custom_call.1} parent=184 // pred_fallthru
        _
    $region185: #{tpu_custom_call.1} parent=1 // pred_fallthru
      _
    // Predicated region
    $region186: #{tpu_custom_call.1} parent=1 // pred_check
      %p344 = pneg %p340
    $region187: #{tpu_custom_call.1} parent=1 // pred_check_branch
      %346 = sbr.rel (%p344) target = $region189
    $region188: #{tpu_custom_call.1} parent=1 // pred_region
      %s347 = sshllo.u32 0, 1
      loop: start=0, step=1, limit=1
      $region190: #{tpu_custom_call.1} parent=188 // loop_pre_header
        _
      $region191: #{tpu_custom_call.1} parent=188 // loop_header
        %s349 = sphi 0, %s353
        %p350 = scmp.ge.s32.totalorder %s349, 1
        %s354 = sphi %s336, %s336
        %s355 = sphi %s337, %s337
      $region192: #{tpu_custom_call.1} parent=188 // loop_header_branch
        %352 = sbr.rel (%p350) target = $region196
      $region193: #{tpu_custom_call.1} parent=188 // loop_body
        %v356 = vld [vmem:[%s354] sm:%s347]
        %357 = vst [vmem:[%s355] sm:%s347] %v356
      $region194: #{tpu_custom_call.1} parent=188 // loop_footer
        %s353 = sadd.s32 1, %s349
      $region195: #{tpu_custom_call.1} parent=188 // loop_footer_branch
        %348 = sbr.rel target = $region191
      $region196: #{tpu_custom_call.1} parent=188 // loop_exit
        _
    $region189: #{tpu_custom_call.1} parent=1 // pred_fallthru
      _
    // Predicated region
    $region208: #{tpu_custom_call.1} parent=1 // pred_check
      _
    $region209: #{tpu_custom_call.1} parent=1 // pred_check_branch
      %381 = sbr.rel (0) target = $region211
    $region210: #{tpu_custom_call.1} parent=1 // pred_region
      %382 = vsyncadd %s338, 16
    $region211: #{tpu_custom_call.1} parent=1 // pred_fallthru
      _
    %s383 = sadd.s32 %s14, 7
    %s384 = sld [smem:[#allocation5 + %s383]]
    %p385 = scmp.gt.s32.totalorder %s384, 0
    %s386 = scalar_select %p385, %s384, 0
    %p387 = scmp.lt.s32.totalorder %s386, 63
    %s388 = scalar_select %p387, %s386, 63
    %s389 = scalar_lea.vmem %s1, %s388
    %s390 = scalar_lea.vmem [#allocation2], 7
    %s391 = scalar_lea.sflag [#allocation3], 7
    %p393 = scmp.lt.u32.totalorder 1, 8
    %p394 = pneg %p393
    // Predicated region
    $region212: #{tpu_custom_call.1} parent=1 // pred_check
      _
    $region213: #{tpu_custom_call.1} parent=1 // pred_check_branch
      %396 = sbr.rel (%p393) target = $region215
    $region214: #{tpu_custom_call.1} parent=1 // pred_region
      %s411 = sand.u32 1, 7
      %p412 = scmp.eq.s32.totalorder %s411, 0
      %p413 = pneg %p412
      // Predicated region
      $region227: #{tpu_custom_call.1} parent=214 // pred_check
        _
      $region228: #{tpu_custom_call.1} parent=214 // pred_check_branch
        %415 = sbr.rel (%p412) target = $region230
      $region229: #{tpu_custom_call.1} parent=214 // pred_region
        %s416 = sand.u32 1, 7
        %s417 = ssub.s32 1, %s416
        %s418 = scalar_lea.vmem %s389, %s417
        %s419 = ssub.s32 1, %s416
        %s420 = scalar_lea.vmem %s390, %s419 [#allocation2]
        %s421 = sshllo.u32 0, %s416
        loop: start=0, step=1, limit=1
        $region231: #{tpu_custom_call.1} parent=229 // loop_pre_header
          _
        $region232: #{tpu_custom_call.1} parent=229 // loop_header
          %s423 = sphi 0, %s427
          %p424 = scmp.ge.s32.totalorder %s423, 1
          %s428 = sphi %s418, %s418
          %s429 = sphi %s420, %s420
        $region233: #{tpu_custom_call.1} parent=229 // loop_header_branch
          %426 = sbr.rel (%p424) target = $region237
        $region234: #{tpu_custom_call.1} parent=229 // loop_body
          %v430 = vld [vmem:[%s428] sm:%s421]
          %431 = vst [vmem:[%s429] sm:%s421] %v430
        $region235: #{tpu_custom_call.1} parent=229 // loop_footer
          %s427 = sadd.s32 1, %s423
        $region236: #{tpu_custom_call.1} parent=229 // loop_footer_branch
          %422 = sbr.rel target = $region232
        $region237: #{tpu_custom_call.1} parent=229 // loop_exit
          _
      $region230: #{tpu_custom_call.1} parent=214 // pred_fallthru
        _
    $region215: #{tpu_custom_call.1} parent=1 // pred_fallthru
      _
    // Predicated region
    $region216: #{tpu_custom_call.1} parent=1 // pred_check
      %p397 = pneg %p393
    $region217: #{tpu_custom_call.1} parent=1 // pred_check_branch
      %399 = sbr.rel (%p397) target = $region219
    $region218: #{tpu_custom_call.1} parent=1 // pred_region
      %s400 = sshllo.u32 0, 1
      loop: start=0, step=1, limit=1
      $region220: #{tpu_custom_call.1} parent=218 // loop_pre_header
        _
      $region221: #{tpu_custom_call.1} parent=218 // loop_header
        %s402 = sphi 0, %s406
        %p403 = scmp.ge.s32.totalorder %s402, 1
        %s407 = sphi %s389, %s389
        %s408 = sphi %s390, %s390
      $region222: #{tpu_custom_call.1} parent=218 // loop_header_branch
        %405 = sbr.rel (%p403) target = $region226
      $region223: #{tpu_custom_call.1} parent=218 // loop_body
        %v409 = vld [vmem:[%s407] sm:%s400]
        %410 = vst [vmem:[%s408] sm:%s400] %v409
      $region224: #{tpu_custom_call.1} parent=218 // loop_footer
        %s406 = sadd.s32 1, %s402
      $region225: #{tpu_custom_call.1} parent=218 // loop_footer_branch
        %401 = sbr.rel target = $region221
      $region226: #{tpu_custom_call.1} parent=218 // loop_exit
        _
    $region219: #{tpu_custom_call.1} parent=1 // pred_fallthru
      _
    // Predicated region
    $region238: #{tpu_custom_call.1} parent=1 // pred_check
      _
    $region239: #{tpu_custom_call.1} parent=1 // pred_check_branch
      %434 = sbr.rel (0) target = $region241
    $region240: #{tpu_custom_call.1} parent=1 // pred_region
      %435 = vsyncadd %s391, 16
    $region241: #{tpu_custom_call.1} parent=1 // pred_fallthru
      _
    loop: start=0, step=1, limit=8
    $region242: #{tpu_custom_call.1} parent=1 // loop_pre_header
      _
    $region243: #{tpu_custom_call.1} parent=1 // loop_header
      %s437 = sphi 0, %s441
      %p438 = scmp.ge.s32.totalorder %s437, 8
    $region244: #{tpu_custom_call.1} parent=1 // loop_header_branch
      %440 = sbr.rel (%p438) target = $region248
    $region245: #{tpu_custom_call.1} parent=1 // loop_body
      %p442 = scmp.lt.s32.totalorder %s437, 0
      %s443 = ssub.s32 0, %s437
      %s444 = scalar_select %p442, %s443, %s437
      %s445 = sand.u32 %s444, 7
      %s446 = ssub.s32 0, %s445
      %s447 = scalar_select %p442, %s446, %s445
      %p448 = scmp.ne.s32.totalorder %s447, 0
      %p449 = scmp.lt.s32.totalorder %s447, 0
      %p450 = pnand %p449, %p448
      %p451 = pneg %p450
      %s452 = sadd.s32 %s447, 8
      %s453 = scalar_select %p451, %s452, %s447
      %s454 = scalar_lea.sflag [#allocation3], %s453
      %s455 = smul.u32 1, 1
      %s456 = sshll.u32 %s455, 4
      %457 = dma.done %s454, %s456
      %s458 = sadd.s32 %s437, 8
      %s459 = sadd.s32 %s14, %s458
      %s460 = sld [smem:[#allocation5 + %s459]]
      %p461 = scmp.gt.s32.totalorder %s460, 0
      %s462 = scalar_select %p461, %s460, 0
      %p463 = scmp.lt.s32.totalorder %s462, 63
      %s464 = scalar_select %p463, %s462, 63
      %p465 = scmp.lt.s32.totalorder %s458, 0
      %s466 = ssub.s32 0, %s458
      %s467 = scalar_select %p465, %s466, %s458
      %s468 = sand.u32 %s467, 7
      %s469 = ssub.s32 0, %s468
      %s470 = scalar_select %p465, %s469, %s468
      %p471 = scmp.ne.s32.totalorder %s470, 0
      %p472 = scmp.lt.s32.totalorder %s470, 0
      %p473 = pnand %p472, %p471
      %p474 = pneg %p473
      %s475 = sadd.s32 %s470, 8
      %s476 = scalar_select %p474, %s475, %s470
      %s477 = scalar_lea.vmem %s1, %s464
      %s478 = scalar_lea.vmem [#allocation2], %s458
      %s479 = scalar_lea.sflag [#allocation3], %s476
      %p481 = scmp.lt.u32.totalorder 1, 8
      %p482 = pneg %p481
      // Predicated region
      $region249: #{tpu_custom_call.1} parent=245 // pred_check
        _
      $region250: #{tpu_custom_call.1} parent=245 // pred_check_branch
        %484 = sbr.rel (%p481) target = $region252
      $region251: #{tpu_custom_call.1} parent=245 // pred_region
        %s499 = sand.u32 1, 7
        %p500 = scmp.eq.s32.totalorder %s499, 0
        %p501 = pneg %p500
        // Predicated region
        $region264: #{tpu_custom_call.1} parent=251 // pred_check
          _
        $region265: #{tpu_custom_call.1} parent=251 // pred_check_branch
          %503 = sbr.rel (%p500) target = $region267
        $region266: #{tpu_custom_call.1} parent=251 // pred_region
          %s504 = sand.u32 1, 7
          %s505 = ssub.s32 1, %s504
          %s506 = scalar_lea.vmem %s477, %s505
          %s507 = ssub.s32 1, %s504
          %s508 = scalar_lea.vmem %s478, %s507 [#allocation2]
          %s509 = sshllo.u32 0, %s504
          loop: start=0, step=1, limit=1
          $region268: #{tpu_custom_call.1} parent=266 // loop_pre_header
            _
          $region269: #{tpu_custom_call.1} parent=266 // loop_header
            %s511 = sphi 0, %s515
            %p512 = scmp.ge.s32.totalorder %s511, 1
            %s516 = sphi %s506, %s506
            %s517 = sphi %s508, %s508
          $region270: #{tpu_custom_call.1} parent=266 // loop_header_branch
            %514 = sbr.rel (%p512) target = $region274
          $region271: #{tpu_custom_call.1} parent=266 // loop_body
            %v518 = vld [vmem:[%s516] sm:%s509]
            %519 = vst [vmem:[%s517] sm:%s509] %v518
          $region272: #{tpu_custom_call.1} parent=266 // loop_footer
            %s515 = sadd.s32 1, %s511
          $region273: #{tpu_custom_call.1} parent=266 // loop_footer_branch
            %510 = sbr.rel target = $region269
          $region274: #{tpu_custom_call.1} parent=266 // loop_exit
            _
        $region267: #{tpu_custom_call.1} parent=251 // pred_fallthru
          _
      $region252: #{tpu_custom_call.1} parent=245 // pred_fallthru
        _
      // Predicated region
      $region253: #{tpu_custom_call.1} parent=245 // pred_check
        %p485 = pneg %p481
      $region254: #{tpu_custom_call.1} parent=245 // pred_check_branch
        %487 = sbr.rel (%p485) target = $region256
      $region255: #{tpu_custom_call.1} parent=245 // pred_region
        %s488 = sshllo.u32 0, 1
        loop: start=0, step=1, limit=1
        $region257: #{tpu_custom_call.1} parent=255 // loop_pre_header
          _
        $region258: #{tpu_custom_call.1} parent=255 // loop_header
          %s490 = sphi 0, %s494
          %p491 = scmp.ge.s32.totalorder %s490, 1
          %s495 = sphi %s477, %s477
          %s496 = sphi %s478, %s478
        $region259: #{tpu_custom_call.1} parent=255 // loop_header_branch
          %493 = sbr.rel (%p491) target = $region263
        $region260: #{tpu_custom_call.1} parent=255 // loop_body
          %v497 = vld [vmem:[%s495] sm:%s488]
          %498 = vst [vmem:[%s496] sm:%s488] %v497
        $region261: #{tpu_custom_call.1} parent=255 // loop_footer
          %s494 = sadd.s32 1, %s490
        $region262: #{tpu_custom_call.1} parent=255 // loop_footer_branch
          %489 = sbr.rel target = $region258
        $region263: #{tpu_custom_call.1} parent=255 // loop_exit
          _
      $region256: #{tpu_custom_call.1} parent=245 // pred_fallthru
        _
      // Predicated region
      $region275: #{tpu_custom_call.1} parent=245 // pred_check
        _
      $region276: #{tpu_custom_call.1} parent=245 // pred_check_branch
        %522 = sbr.rel (0) target = $region278
      $region277: #{tpu_custom_call.1} parent=245 // pred_region
        %523 = vsyncadd %s479, 16
      $region278: #{tpu_custom_call.1} parent=245 // pred_fallthru
        _
    $region246: #{tpu_custom_call.1} parent=1 // loop_footer
      %s441 = sadd.s32 1, %s437
    $region247: #{tpu_custom_call.1} parent=1 // loop_footer_branch
      %436 = sbr.rel target = $region243
    $region248: #{tpu_custom_call.1} parent=1 // loop_exit
      _
    %s524 = smul.u32 1, 1
    %s525 = sshll.u32 %s524, 4
    %526 = dma.done [#allocation3], %s525
    %s527 = sshll.u32 %s524, 4
    %528 = dma.done %s73, %s527
    %s529 = sshll.u32 %s524, 4
    %530 = dma.done %s126, %s529
    %s531 = sshll.u32 %s524, 4
    %532 = dma.done %s179, %s531
    %s533 = sshll.u32 %s524, 4
    %534 = dma.done %s232, %s533
    %s535 = sshll.u32 %s524, 4
    %536 = dma.done %s285, %s535
    %s537 = sshll.u32 %s524, 4
    %538 = dma.done %s338, %s537
    %s539 = sshll.u32 %s524, 4
    %540 = dma.done %s391, %s539
    %v541 = vld [vmem:[#allocation2] sm:$0xff]
    %v542 = vld [vmem:[#allocation2 + $0x8] sm:$0xff]
    %vm543 = vcmask 261120
    %544 = vst.msk [vmem:[#allocation6] sm:$0xff] %vm543, %v541
    %545 = vst.msk [vmem:[#allocation6 + $0x8] sm:$0xff] %vm543, %v542
    // Predicated region
    $region279: #{tpu_custom_call.1} parent=1 // pred_check
      _
    $region280: #{tpu_custom_call.1} parent=1 // pred_check_branch
      %547 = sbr.rel (0) target = $region282
    $region281: #{tpu_custom_call.1} parent=1 // pred_region
      %s549 = ssub.s32 256, 256
      %550 = vsyncadd [#allocation7], %s549
      %s551 = sshll.u32 [#allocation6], 4
      %s552 = int_to_ptr.vmem [resolvable:$true] %s551
      %557 = dma.vmem_to_hbm [thread:$0]  %s552, 256, %s2, [#allocation7], 128, 128, 8
    $region282: #{tpu_custom_call.1} parent=1 // pred_fallthru
      _
    // Predicated region
    $region283: #{tpu_custom_call.1} parent=1 // pred_check
      _
    $region284: #{tpu_custom_call.1} parent=1 // pred_check_branch
      %559 = sbr.rel (0) target = $region286
    $region285: #{tpu_custom_call.1} parent=1 // pred_region
      %560 = dma.done [#allocation7], 256
    $region286: #{tpu_custom_call.1} parent=1 // pred_fallthru
      _
    %561 = vsyncpa [#allocation7], 1
  %562 = vsyncmov [#allocation3]
  %s563 = vpop.sfrf %562
  %p564 = scmp.eq.s32.totalorder %s563, 0
  %p565 = pneg %p564
  %567 = shalt.err (%p565)
  %s568 = scalar_lea.sflag [#allocation3], 1
  %569 = vsyncmov %s568
  %s570 = vpop.sfrf %569
  %p571 = scmp.eq.s32.totalorder %s570, 0
  %p572 = pneg %p571
  %574 = shalt.err (%p572)
  %s575 = scalar_lea.sflag [#allocation3], 2
  %576 = vsyncmov %s575
  %s577 = vpop.sfrf %576
  %p578 = scmp.eq.s32.totalorder %s577, 0
  %p579 = pneg %p578
  %581 = shalt.err (%p579)
  %s582 = scalar_lea.sflag [#allocation3], 3
  %583 = vsyncmov %s582
  %s584 = vpop.sfrf %583
  %p585 = scmp.eq.s32.totalorder %s584, 0
  %p586 = pneg %p585
  %588 = shalt.err (%p586)
  %s589 = scalar_lea.sflag [#allocation3], 4
  %590 = vsyncmov %s589
  %s591 = vpop.sfrf %590
  %p592 = scmp.eq.s32.totalorder %s591, 0
  %p593 = pneg %p592
  %595 = shalt.err (%p593)
  %s596 = scalar_lea.sflag [#allocation3], 5
  %597 = vsyncmov %s596
  %s598 = vpop.sfrf %597
  %p599 = scmp.eq.s32.totalorder %s598, 0
  %p600 = pneg %p599
  %602 = shalt.err (%p600)
  %s603 = scalar_lea.sflag [#allocation3], 6
  %604 = vsyncmov %s603
  %s605 = vpop.sfrf %604
  %p606 = scmp.eq.s32.totalorder %s605, 0
  %p607 = pneg %p606
  %609 = shalt.err (%p607)
  %s610 = scalar_lea.sflag [#allocation3], 7
  %611 = vsyncmov %s610
  %s612 = vpop.sfrf %611
  %p613 = scmp.eq.s32.totalorder %s612, 0
  %p614 = pneg %p613
  %616 = shalt.err (%p614)

</llo_original>
